<compile_context>
chip_gen: v7x
topology: tpu7x:2x2x1
jax: 0.10.0
libtpu: 0.0.40
codegen_flags: <defaults>
</compile_context>

<pallas_src>
import jax
import jax.numpy as jnp
import numpy as np
from jax.experimental import pallas as pl
from jax.experimental.pallas import tpu as pltpu


# ----------------------------------------------------------------------- fused kernel body
def _make_decoder_kernel(latent, layer_meta, compute_dtype):
    """layer_meta: list of dicts with static K / has_bias / shapes per decoder layer."""

    def kernel(*refs):
        z_ref, wlin_ref, blin_ref = refs[0], refs[1], refs[2]
        layer_refs = refs[3:-1]
        o_ref = refs[-1]

        b = pl.program_id(0)

        # ---- dec_lin, landing directly in (N0, F0) layout -----------------------------
        # x[n, f] = b_lin[n, f] + sum_l z[b, l] * W_lin[l, n, f]
        # z lives in SMEM -> scalar reads broadcast over a lane-dense (N0, F0) tile.
        # Replaces the old (1, N0*F0) matmul + B*N0 masked single-row refold copies.
        x = blin_ref[...]
        for l in range(latent):
            x = x + z_ref[b, l] * wlin_ref[l]

        # ---- decoder layers: ReLU -> pool (U) -> ChebConv ------------------------------
        idx = 0
        for m in layer_meta:
            u_ref = layer_refs[idx]
            s_ref = layer_refs[idx + 1]
            w_ref = layer_refs[idx + 2]
            idx += 3
            bias_ref = None
            if m["has_bias"]:
                bias_ref = layer_refs[idx]
                idx += 1
            K = m["K"]

            y = jnp.maximum(x, 0.0).astype(compute_dtype)          # ReLU, MXU dtype
            # Pool / upsample for this batch element: (N_out, N_in) @ (N_in, F_in)
            t0 = jnp.dot(u_ref[...], y, preferred_element_type=jnp.float32)
            t0c = t0.astype(compute_dtype)
            # Per-order projection, accumulated as each T_k is produced (no concatenate).
            out = jnp.dot(t0c, w_ref[0], preferred_element_type=jnp.float32)
            if K > 1:
                t1 = jnp.dot(s_ref[...], t0c, preferred_element_type=jnp.float32)
                t1c = t1.astype(compute_dtype)
                out = out + jnp.dot(t1c, w_ref[1], preferred_element_type=jnp.float32)
                tp, tc, tcc = t0, t1, t1c
                for k in range(2, K):
                    # T_k = 2 S T_{k-1} - T_{k-2}  (one VPU scale; no pre-scaled 2S copy)
                    tn = 2.0 * jnp.dot(s_ref[...], tcc,
                                       preferred_element_type=jnp.float32) - tp
                    tnc = tn.astype(compute_dtype)
                    out = out + jnp.dot(tnc, w_ref[k],
                                        preferred_element_type=jnp.float32)
                    tp, tc, tcc = tc, tn, tnc
            if bias_ref is not None:
                out = out + bias_ref[...]
            x = out

        o_ref[...] = x.astype(o_ref.dtype)          # (N_last, F_last) block for batch b

    return kernel


# --------------------------------------------------------------------------- cost estimate
def _cost_estimate(B, latent, meta, w_itemsize):
    N0, F0 = meta[0]["N_in"], meta[0]["F_in"]
    flops = 2 * B * latent * N0 * F0
    bytes_accessed = 4 * (B * latent + latent * N0 * F0 + N0 * F0)
    for m in meta:
        flops += B * (
            2 * m["N_out"] * m["N_in"] * m["F_in"]                     # pool
            + (m["K"] - 1) * 2 * m["N_out"] * m["N_out"] * m["F_in"]   # Cheb recurrence
            + m["K"] * 2 * m["N_out"] * m["F_in"] * m["F_out"])        # projections
        bytes_accessed += w_itemsize * (
            m["N_out"] * m["N_in"] + m["N_out"] * m["N_out"]
            + m["K"] * m["F_in"] * m["F_out"])
        if m["has_bias"]:
            bytes_accessed += 4 * m["F_out"]
    bytes_accessed += 4 * B * meta[-1]["N_out"] * meta[-1]["F_out"]
    return pl.CostEstimate(flops=int(flops), transcendentals=0,
                           bytes_accessed=int(bytes_accessed))


# ------------------------------------------------------------------------------ param prep
def prepare_fused_params(params, *, compute_dtype=jnp.bfloat16):
    """Kernel-layout parameters. Graph operators / Cheb weights in `compute_dtype`."""
    n_layers = len(params["cheb_w"])
    latent, nf = params["w_lin"].shape
    F0 = params["cheb_w"][0].shape[1]
    N0 = nf // F0

    arrays = [
        params["w_lin"].reshape(latent, N0, F0).astype(jnp.float32),   # (latent, N0, F0)
        params["b_lin"].reshape(N0, F0).astype(jnp.float32),           # (N0, F0)
    ]
    meta = []
    for i in range(n_layers):
        U = params["upsample"][i]            # (N_out, N_in)
        S = params["adj_norm"][i]            # (N_out, N_out)
        W = params["cheb_w"][i]              # (K, F_in, F_out)
        b = params["cheb_b"][i]              # (F_out,)
        K, F_in, F_out = W.shape
        N_out, N_in = U.shape
        has_bias = (i != n_layers - 1)
        arrays += [U.astype(compute_dtype),
                   S.astype(compute_dtype),
                   W.astype(compute_dtype)]
        if has_bias:                          # last-layer bias is unused -> not shipped
            arrays.append(b.reshape(1, F_out).astype(jnp.float32))
        meta.append(dict(K=K, has_bias=has_bias,
                         N_in=N_in, N_out=N_out, F_in=F_in, F_out=F_out))
    return arrays, meta


# --------------------------------------------------------------------------------- wrapper
def decoder3dmesh_forward(z, fused_arrays, meta, *, compute_dtype=jnp.bfloat16):
    """Full Decoder3DMesh forward as a single fused Pallas kernel call (grid over batch)."""
    B, latent = z.shape
    N_last, F_last = meta[-1]["N_out"], meta[-1]["F_out"]

    kernel = _make_decoder_kernel(latent, meta, compute_dtype)

    def resident(arr):
        # Full-array block + constant index_map: DMA'd once, VMEM-resident for all b.
        nd = arr.ndim
        return pl.BlockSpec(arr.shape, lambda b, _nd=nd: (0,) * _nd)

    in_specs = [pl.BlockSpec(memory_space=pltpu.MemorySpace.SMEM)]      # z -> SMEM scalars
    in_specs += [resident(a) for a in fused_arrays]

    out_spec = pl.BlockSpec((None, N_last, F_last), lambda b: (b, 0, 0))

    return pl.pallas_call(
        kernel,
        grid=(B,),
        in_specs=in_specs,
        out_specs=out_spec,
        out_shape=jax.ShapeDtypeStruct((B, N_last, F_last), jnp.float32),
        compiler_params=pltpu.CompilerParams(
            dimension_semantics=("parallel",)),      # batch axis -> 2nd TC on v7x
        cost_estimate=_cost_estimate(B, latent, meta,
                                     jnp.dtype(compute_dtype).itemsize),
    )(z, *fused_arrays)


# ------------------------------------------------------------------------------- reference
def decoder3dmesh_reference(z, params):
    x = z @ params["w_lin"] + params["b_lin"]
    B = x.shape[0]
    F0 = params["cheb_w"][0].shape[1]
    x = x.reshape(B, -1, F0)
    n_layers = len(params["cheb_w"])
    for i in range(n_layers):
        U, S, W, b = (params["upsample"][i], params["adj_norm"][i],
                      params["cheb_w"][i], params["cheb_b"][i])
        x = jnp.maximum(x, 0.0)
        x = jnp.einsum("oi,bif->bof", U, x)
        K = W.shape[0]
        tx0 = x
        out = jnp.einsum("bnf,fg->bng", tx0, W[0])
        if K > 1:
            tx1 = jnp.einsum("nm,bmf->bnf", S, tx0)
            out = out + jnp.einsum("bnf,fg->bng", tx1, W[1])
            for k in range(2, K):
                tx2 = 2.0 * jnp.einsum("nm,bmf->bnf", S, tx1) - tx0
                out = out + jnp.einsum("bnf,fg->bng", tx2, W[k])
                tx0, tx1 = tx1, tx2
        if i != n_layers - 1:
            out = out + b
        x = out
    return x


# ----------------------------------------------------------------------------- param setup
def _ring_norm_adjacency(n):
    """Symmetric-normalized ring adjacency (dense equivalent of ChebConv_Coma.norm)."""
    A = np.zeros((n, n), np.float32)
    idx = np.arange(n)
    A[idx, (idx + 1) % n] = 1.0
    A[(idx + 1) % n, idx] = 1.0
    A[idx, (idx + 3) % n] = 1.0          # a few chords to make it less trivial
    A[(idx + 3) % n, idx] = 1.0
    deg = A.sum(axis=1)
    dinv = np.where(deg > 0, deg ** -0.5, 0.0).astype(np.float32)
    return jnp.asarray(dinv[:, None] * A * dinv[None, :])


def make_params(key, *, num_features, num_conv_filters_dec, node_counts, latent_dim, K_list):
    # filters_dec = reversed([num_features] + num_conv_filters_dec)
    filters_dec = list(reversed([num_features] + list(num_conv_filters_dec)))
    n_layers = len(filters_dec) - 1
    N0 = node_counts[0]
    n_features_before_z = N0 * filters_dec[0]

    keys = jax.random.split(key, 2 + 4 * n_layers)
    ki = iter(keys)

    params = {
        "w_lin": 0.1 * jax.random.normal(next(ki), (latent_dim, n_features_before_z), jnp.float32),
        "b_lin": 0.1 * jax.random.normal(next(ki), (n_features_before_z,), jnp.float32),
        "upsample": [],
        "adj_norm": [],
        "cheb_w": [],
        "cheb_b": [],
    }
    for i in range(n_layers):
        N_in, N_out = node_counts[i], node_counts[i + 1]
        F_in, F_out = filters_dec[i], filters_dec[i + 1]
        params["upsample"].append(
            jax.random.uniform(next(ki), (N_out, N_in), jnp.float32, 0.0, 1.0) / N_in)
        params["adj_norm"].append(_ring_norm_adjacency(N_out))
        params["cheb_w"].append(
            0.2 * jax.random.normal(next(ki), (K_list[i], F_in, F_out), jnp.float32))
        params["cheb_b"].append(
            0.1 * jax.random.normal(next(ki), (F_out,), jnp.float32))
    return params


# ------------------------------------------------------------------------------------ main
if __name__ == "__main__":
    key = jax.random.PRNGKey(0)
    k_params, k_x = jax.random.split(key)

    # Small, module-consistent config.
    num_features = 3                      # 3D mesh coordinates (final out channels)
    num_conv_filters_dec = [16, 16, 32]   # encoder-order filters -> decoder [32,16,16,3]
    node_counts = [8, 16, 32, 64]         # decoder node counts (coarse -> fine)
    latent_dim = 16
    K_list = [3, 3, 3]
    batch = 2

    params = make_params(
        k_params,
        num_features=num_features,
        num_conv_filters_dec=num_conv_filters_dec,
        node_counts=node_counts,
        latent_dim=latent_dim,
        K_list=K_list,
    )
    z = jax.random.normal(k_x, (batch, latent_dim), jnp.float32)

    ref = decoder3dmesh_reference(z, params)

    # 1) Exact-correctness check: all-f32 kernel path.
    arrays_f32, meta = prepare_fused_params(params, compute_dtype=jnp.float32)
    out_f32 = jax.block_until_ready(
        decoder3dmesh_forward(z, arrays_f32, meta, compute_dtype=jnp.float32))
    assert out_f32.shape == (batch, node_counts[-1], num_features), out_f32.shape
    np.testing.assert_allclose(np.asarray(out_f32), np.asarray(ref), rtol=1e-4, atol=1e-4)

    # 2) Performance path: bf16 MXU operands, f32 accumulation (relaxed tolerance).
    arrays_bf16, meta = prepare_fused_params(params, compute_dtype=jnp.bfloat16)
    out_bf16 = jax.block_until_ready(
        decoder3dmesh_forward(z, arrays_bf16, meta, compute_dtype=jnp.bfloat16))
    assert out_bf16.shape == (batch, node_counts[-1], num_features), out_bf16.shape
    np.testing.assert_allclose(np.asarray(out_bf16), np.asarray(ref), rtol=5e-2, atol=5e-2)

    print("KERNEL_OK")
</pallas_src>

<mosaic_0001>
module attributes {stable_mosaic.version = 11 : i64} {
  func.func @kernel(%arg0: i32, %arg1: memref<2x16xf32, #tpu.memory_space<smem>>, %arg2: memref<16x8x32xf32, #tpu.memory_space<vmem>>, %arg3: memref<8x32xf32, #tpu.memory_space<vmem>>, %arg4: memref<16x8xf32, #tpu.memory_space<vmem>>, %arg5: memref<16x16xf32, #tpu.memory_space<vmem>>, %arg6: memref<3x32x16xf32, #tpu.memory_space<vmem>>, %arg7: memref<1x16xf32, #tpu.memory_space<vmem>>, %arg8: memref<32x16xf32, #tpu.memory_space<vmem>>, %arg9: memref<32x32xf32, #tpu.memory_space<vmem>>, %arg10: memref<3x16x16xf32, #tpu.memory_space<vmem>>, %arg11: memref<1x16xf32, #tpu.memory_space<vmem>>, %arg12: memref<64x32xf32, #tpu.memory_space<vmem>>, %arg13: memref<64x64xf32, #tpu.memory_space<vmem>>, %arg14: memref<3x16x3xf32, #tpu.memory_space<vmem>>, %arg15: memref<1x64x3xf32, #tpu.memory_space<vmem>>) attributes {dimension_semantics = [#tpu.dimension_semantics<parallel>], iteration_bounds = array<i64: 2>, scalar_prefetch = 0 : i64, scratch_operands = 0 : i64, tpu.core_type = #tpu.core_type<tc>, window_params = [{transform_indices = @transform_0, window_bounds = array<i64: 2, 16>}, {pipeline_mode = #tpu.pipeline_mode<synchronous>, transform_indices = @transform_1, window_bounds = array<i64: 16, 8, 32>}, {pipeline_mode = #tpu.pipeline_mode<synchronous>, transform_indices = @transform_2, window_bounds = array<i64: 8, 32>}, {pipeline_mode = #tpu.pipeline_mode<synchronous>, transform_indices = @transform_3, window_bounds = array<i64: 16, 8>}, {pipeline_mode = #tpu.pipeline_mode<synchronous>, transform_indices = @transform_4, window_bounds = array<i64: 16, 16>}, {pipeline_mode = #tpu.pipeline_mode<synchronous>, transform_indices = @transform_5, window_bounds = array<i64: 3, 32, 16>}, {pipeline_mode = #tpu.pipeline_mode<synchronous>, transform_indices = @transform_6, window_bounds = array<i64: 1, 16>}, {pipeline_mode = #tpu.pipeline_mode<synchronous>, transform_indices = @transform_7, window_bounds = array<i64: 32, 16>}, {pipeline_mode = #tpu.pipeline_mode<synchronous>, transform_indices = @transform_8, window_bounds = array<i64: 32, 32>}, {pipeline_mode = #tpu.pipeline_mode<synchronous>, transform_indices = @transform_9, window_bounds = array<i64: 3, 16, 16>}, {pipeline_mode = #tpu.pipeline_mode<synchronous>, transform_indices = @transform_10, window_bounds = array<i64: 1, 16>}, {pipeline_mode = #tpu.pipeline_mode<synchronous>, transform_indices = @transform_11, window_bounds = array<i64: 64, 32>}, {pipeline_mode = #tpu.pipeline_mode<synchronous>, transform_indices = @transform_12, window_bounds = array<i64: 64, 64>}, {pipeline_mode = #tpu.pipeline_mode<synchronous>, transform_indices = @transform_13, window_bounds = array<i64: 3, 16, 3>}, {transform_indices = @transform_14, window_bounds = array<i64: 1, 64, 3>}]} {
    %c0 = arith.constant 0 : index
    %c0_0 = arith.constant 0 : index
    %0 = vector.load %arg3[%c0, %c0_0] : memref<8x32xf32, #tpu.memory_space<vmem>>, vector<8x32xf32>
    %1 = arith.index_cast %arg0 : i32 to index
    %c0_1 = arith.constant 0 : index
    %2 = memref.load %arg1[%1, %c0_1] : memref<2x16xf32, #tpu.memory_space<smem>>
    %c0_2 = arith.constant 0 : index
    %c0_3 = arith.constant 0 : index
    %c0_4 = arith.constant 0 : index
    %3 = vector.load %arg2[%c0_2, %c0_3, %c0_4] : memref<16x8x32xf32, #tpu.memory_space<vmem>>, vector<1x8x32xf32>
    %4 = vector.shape_cast %3 : vector<1x8x32xf32> to vector<8x32xf32>
    %5 = vector.broadcast %2 : f32 to vector<8x32xf32>
    %6 = arith.mulf %5, %4 : vector<8x32xf32>
    %7 = arith.addf %0, %6 : vector<8x32xf32>
    %8 = arith.index_cast %arg0 : i32 to index
    %c1 = arith.constant 1 : index
    %9 = memref.load %arg1[%8, %c1] : memref<2x16xf32, #tpu.memory_space<smem>>
    %c1_5 = arith.constant 1 : index
    %c0_6 = arith.constant 0 : index
    %c0_7 = arith.constant 0 : index
    %10 = vector.load %arg2[%c1_5, %c0_6, %c0_7] : memref<16x8x32xf32, #tpu.memory_space<vmem>>, vector<1x8x32xf32>
    %11 = vector.shape_cast %10 : vector<1x8x32xf32> to vector<8x32xf32>
    %12 = vector.broadcast %9 : f32 to vector<8x32xf32>
    %13 = arith.mulf %12, %11 : vector<8x32xf32>
    %14 = arith.addf %7, %13 : vector<8x32xf32>
    %15 = arith.index_cast %arg0 : i32 to index
    %c2 = arith.constant 2 : index
    %16 = memref.load %arg1[%15, %c2] : memref<2x16xf32, #tpu.memory_space<smem>>
    %c2_8 = arith.constant 2 : index
    %c0_9 = arith.constant 0 : index
    %c0_10 = arith.constant 0 : index
    %17 = vector.load %arg2[%c2_8, %c0_9, %c0_10] : memref<16x8x32xf32, #tpu.memory_space<vmem>>, vector<1x8x32xf32>
    %18 = vector.shape_cast %17 : vector<1x8x32xf32> to vector<8x32xf32>
    %19 = vector.broadcast %16 : f32 to vector<8x32xf32>
    %20 = arith.mulf %19, %18 : vector<8x32xf32>
    %21 = arith.addf %14, %20 : vector<8x32xf32>
    %22 = arith.index_cast %arg0 : i32 to index
    %c3 = arith.constant 3 : index
    %23 = memref.load %arg1[%22, %c3] : memref<2x16xf32, #tpu.memory_space<smem>>
    %c3_11 = arith.constant 3 : index
    %c0_12 = arith.constant 0 : index
    %c0_13 = arith.constant 0 : index
    %24 = vector.load %arg2[%c3_11, %c0_12, %c0_13] : memref<16x8x32xf32, #tpu.memory_space<vmem>>, vector<1x8x32xf32>
    %25 = vector.shape_cast %24 : vector<1x8x32xf32> to vector<8x32xf32>
    %26 = vector.broadcast %23 : f32 to vector<8x32xf32>
    %27 = arith.mulf %26, %25 : vector<8x32xf32>
    %28 = arith.addf %21, %27 : vector<8x32xf32>
    %29 = arith.index_cast %arg0 : i32 to index
    %c4 = arith.constant 4 : index
    %30 = memref.load %arg1[%29, %c4] : memref<2x16xf32, #tpu.memory_space<smem>>
    %c4_14 = arith.constant 4 : index
    %c0_15 = arith.constant 0 : index
    %c0_16 = arith.constant 0 : index
    %31 = vector.load %arg2[%c4_14, %c0_15, %c0_16] : memref<16x8x32xf32, #tpu.memory_space<vmem>>, vector<1x8x32xf32>
    %32 = vector.shape_cast %31 : vector<1x8x32xf32> to vector<8x32xf32>
    %33 = vector.broadcast %30 : f32 to vector<8x32xf32>
    %34 = arith.mulf %33, %32 : vector<8x32xf32>
    %35 = arith.addf %28, %34 : vector<8x32xf32>
    %36 = arith.index_cast %arg0 : i32 to index
    %c5 = arith.constant 5 : index
    %37 = memref.load %arg1[%36, %c5] : memref<2x16xf32, #tpu.memory_space<smem>>
    %c5_17 = arith.constant 5 : index
    %c0_18 = arith.constant 0 : index
    %c0_19 = arith.constant 0 : index
    %38 = vector.load %arg2[%c5_17, %c0_18, %c0_19] : memref<16x8x32xf32, #tpu.memory_space<vmem>>, vector<1x8x32xf32>
    %39 = vector.shape_cast %38 : vector<1x8x32xf32> to vector<8x32xf32>
    %40 = vector.broadcast %37 : f32 to vector<8x32xf32>
    %41 = arith.mulf %40, %39 : vector<8x32xf32>
    %42 = arith.addf %35, %41 : vector<8x32xf32>
    %43 = arith.index_cast %arg0 : i32 to index
    %c6 = arith.constant 6 : index
    %44 = memref.load %arg1[%43, %c6] : memref<2x16xf32, #tpu.memory_space<smem>>
    %c6_20 = arith.constant 6 : index
    %c0_21 = arith.constant 0 : index
    %c0_22 = arith.constant 0 : index
    %45 = vector.load %arg2[%c6_20, %c0_21, %c0_22] : memref<16x8x32xf32, #tpu.memory_space<vmem>>, vector<1x8x32xf32>
    %46 = vector.shape_cast %45 : vector<1x8x32xf32> to vector<8x32xf32>
    %47 = vector.broadcast %44 : f32 to vector<8x32xf32>
    %48 = arith.mulf %47, %46 : vector<8x32xf32>
    %49 = arith.addf %42, %48 : vector<8x32xf32>
    %50 = arith.index_cast %arg0 : i32 to index
    %c7 = arith.constant 7 : index
    %51 = memref.load %arg1[%50, %c7] : memref<2x16xf32, #tpu.memory_space<smem>>
    %c7_23 = arith.constant 7 : index
    %c0_24 = arith.constant 0 : index
    %c0_25 = arith.constant 0 : index
    %52 = vector.load %arg2[%c7_23, %c0_24, %c0_25] : memref<16x8x32xf32, #tpu.memory_space<vmem>>, vector<1x8x32xf32>
    %53 = vector.shape_cast %52 : vector<1x8x32xf32> to vector<8x32xf32>
    %54 = vector.broadcast %51 : f32 to vector<8x32xf32>
    %55 = arith.mulf %54, %53 : vector<8x32xf32>
    %56 = arith.addf %49, %55 : vector<8x32xf32>
    %57 = arith.index_cast %arg0 : i32 to index
    %c8 = arith.constant 8 : index
    %58 = memref.load %arg1[%57, %c8] : memref<2x16xf32, #tpu.memory_space<smem>>
    %c8_26 = arith.constant 8 : index
    %c0_27 = arith.constant 0 : index
    %c0_28 = arith.constant 0 : index
    %59 = vector.load %arg2[%c8_26, %c0_27, %c0_28] : memref<16x8x32xf32, #tpu.memory_space<vmem>>, vector<1x8x32xf32>
    %60 = vector.shape_cast %59 : vector<1x8x32xf32> to vector<8x32xf32>
    %61 = vector.broadcast %58 : f32 to vector<8x32xf32>
    %62 = arith.mulf %61, %60 : vector<8x32xf32>
    %63 = arith.addf %56, %62 : vector<8x32xf32>
    %64 = arith.index_cast %arg0 : i32 to index
    %c9 = arith.constant 9 : index
    %65 = memref.load %arg1[%64, %c9] : memref<2x16xf32, #tpu.memory_space<smem>>
    %c9_29 = arith.constant 9 : index
    %c0_30 = arith.constant 0 : index
    %c0_31 = arith.constant 0 : index
    %66 = vector.load %arg2[%c9_29, %c0_30, %c0_31] : memref<16x8x32xf32, #tpu.memory_space<vmem>>, vector<1x8x32xf32>
    %67 = vector.shape_cast %66 : vector<1x8x32xf32> to vector<8x32xf32>
    %68 = vector.broadcast %65 : f32 to vector<8x32xf32>
    %69 = arith.mulf %68, %67 : vector<8x32xf32>
    %70 = arith.addf %63, %69 : vector<8x32xf32>
    %71 = arith.index_cast %arg0 : i32 to index
    %c10 = arith.constant 10 : index
    %72 = memref.load %arg1[%71, %c10] : memref<2x16xf32, #tpu.memory_space<smem>>
    %c10_32 = arith.constant 10 : index
    %c0_33 = arith.constant 0 : index
    %c0_34 = arith.constant 0 : index
    %73 = vector.load %arg2[%c10_32, %c0_33, %c0_34] : memref<16x8x32xf32, #tpu.memory_space<vmem>>, vector<1x8x32xf32>
    %74 = vector.shape_cast %73 : vector<1x8x32xf32> to vector<8x32xf32>
    %75 = vector.broadcast %72 : f32 to vector<8x32xf32>
    %76 = arith.mulf %75, %74 : vector<8x32xf32>
    %77 = arith.addf %70, %76 : vector<8x32xf32>
    %78 = arith.index_cast %arg0 : i32 to index
    %c11 = arith.constant 11 : index
    %79 = memref.load %arg1[%78, %c11] : memref<2x16xf32, #tpu.memory_space<smem>>
    %c11_35 = arith.constant 11 : index
    %c0_36 = arith.constant 0 : index
    %c0_37 = arith.constant 0 : index
    %80 = vector.load %arg2[%c11_35, %c0_36, %c0_37] : memref<16x8x32xf32, #tpu.memory_space<vmem>>, vector<1x8x32xf32>
    %81 = vector.shape_cast %80 : vector<1x8x32xf32> to vector<8x32xf32>
    %82 = vector.broadcast %79 : f32 to vector<8x32xf32>
    %83 = arith.mulf %82, %81 : vector<8x32xf32>
    %84 = arith.addf %77, %83 : vector<8x32xf32>
    %85 = arith.index_cast %arg0 : i32 to index
    %c12 = arith.constant 12 : index
    %86 = memref.load %arg1[%85, %c12] : memref<2x16xf32, #tpu.memory_space<smem>>
    %c12_38 = arith.constant 12 : index
    %c0_39 = arith.constant 0 : index
    %c0_40 = arith.constant 0 : index
    %87 = vector.load %arg2[%c12_38, %c0_39, %c0_40] : memref<16x8x32xf32, #tpu.memory_space<vmem>>, vector<1x8x32xf32>
    %88 = vector.shape_cast %87 : vector<1x8x32xf32> to vector<8x32xf32>
    %89 = vector.broadcast %86 : f32 to vector<8x32xf32>
    %90 = arith.mulf %89, %88 : vector<8x32xf32>
    %91 = arith.addf %84, %90 : vector<8x32xf32>
    %92 = arith.index_cast %arg0 : i32 to index
    %c13 = arith.constant 13 : index
    %93 = memref.load %arg1[%92, %c13] : memref<2x16xf32, #tpu.memory_space<smem>>
    %c13_41 = arith.constant 13 : index
    %c0_42 = arith.constant 0 : index
    %c0_43 = arith.constant 0 : index
    %94 = vector.load %arg2[%c13_41, %c0_42, %c0_43] : memref<16x8x32xf32, #tpu.memory_space<vmem>>, vector<1x8x32xf32>
    %95 = vector.shape_cast %94 : vector<1x8x32xf32> to vector<8x32xf32>
    %96 = vector.broadcast %93 : f32 to vector<8x32xf32>
    %97 = arith.mulf %96, %95 : vector<8x32xf32>
    %98 = arith.addf %91, %97 : vector<8x32xf32>
    %99 = arith.index_cast %arg0 : i32 to index
    %c14 = arith.constant 14 : index
    %100 = memref.load %arg1[%99, %c14] : memref<2x16xf32, #tpu.memory_space<smem>>
    %c14_44 = arith.constant 14 : index
    %c0_45 = arith.constant 0 : index
    %c0_46 = arith.constant 0 : index
    %101 = vector.load %arg2[%c14_44, %c0_45, %c0_46] : memref<16x8x32xf32, #tpu.memory_space<vmem>>, vector<1x8x32xf32>
    %102 = vector.shape_cast %101 : vector<1x8x32xf32> to vector<8x32xf32>
    %103 = vector.broadcast %100 : f32 to vector<8x32xf32>
    %104 = arith.mulf %103, %102 : vector<8x32xf32>
    %105 = arith.addf %98, %104 : vector<8x32xf32>
    %106 = arith.index_cast %arg0 : i32 to index
    %c15 = arith.constant 15 : index
    %107 = memref.load %arg1[%106, %c15] : memref<2x16xf32, #tpu.memory_space<smem>>
    %c15_47 = arith.constant 15 : index
    %c0_48 = arith.constant 0 : index
    %c0_49 = arith.constant 0 : index
    %108 = vector.load %arg2[%c15_47, %c0_48, %c0_49] : memref<16x8x32xf32, #tpu.memory_space<vmem>>, vector<1x8x32xf32>
    %109 = vector.shape_cast %108 : vector<1x8x32xf32> to vector<8x32xf32>
    %110 = vector.broadcast %107 : f32 to vector<8x32xf32>
    %111 = arith.mulf %110, %109 : vector<8x32xf32>
    %112 = arith.addf %105, %111 : vector<8x32xf32>
    %cst = arith.constant 0.000000e+00 : f32
    %113 = vector.broadcast %cst : f32 to vector<8x32xf32>
    %114 = arith.maximumf %112, %113 : vector<8x32xf32>
    %c0_50 = arith.constant 0 : index
    %c0_51 = arith.constant 0 : index
    %115 = vector.load %arg4[%c0_50, %c0_51] : memref<16x8xf32, #tpu.memory_space<vmem>>, vector<16x8xf32>
    %cst_52 = arith.constant dense<0.000000e+00> : vector<16x32xf32>
    %116 = tpu.matmul %115, %114, %cst_52 {dimension_numbers = #tpu.dot_dimension_numbers<[1], [0], [0], [1], [0, 0, 1, 1], [], []>} : vector<16x8xf32>, vector<8x32xf32>, vector<16x32xf32> -> vector<16x32xf32>
    %c0_53 = arith.constant 0 : index
    %c0_54 = arith.constant 0 : index
    %c0_55 = arith.constant 0 : index
    %117 = vector.load %arg6[%c0_53, %c0_54, %c0_55] : memref<3x32x16xf32, #tpu.memory_space<vmem>>, vector<1x32x16xf32>
    %118 = vector.shape_cast %117 : vector<1x32x16xf32> to vector<32x16xf32>
    %cst_56 = arith.constant dense<0.000000e+00> : vector<16x16xf32>
    %119 = tpu.matmul %116, %118, %cst_56 {dimension_numbers = #tpu.dot_dimension_numbers<[1], [0], [0], [1], [0, 0, 1, 1], [], []>} : vector<16x32xf32>, vector<32x16xf32>, vector<16x16xf32> -> vector<16x16xf32>
    %c0_57 = arith.constant 0 : index
    %c0_58 = arith.constant 0 : index
    %120 = vector.load %arg5[%c0_57, %c0_58] : memref<16x16xf32, #tpu.memory_space<vmem>>, vector<16x16xf32>
    %cst_59 = arith.constant dense<0.000000e+00> : vector<16x32xf32>
    %121 = tpu.matmul %120, %116, %cst_59 {dimension_numbers = #tpu.dot_dimension_numbers<[1], [0], [0], [1], [0, 0, 1, 1], [], []>} : vector<16x16xf32>, vector<16x32xf32>, vector<16x32xf32> -> vector<16x32xf32>
    %c1_60 = arith.constant 1 : index
    %c0_61 = arith.constant 0 : index
    %c0_62 = arith.constant 0 : index
    %122 = vector.load %arg6[%c1_60, %c0_61, %c0_62] : memref<3x32x16xf32, #tpu.memory_space<vmem>>, vector<1x32x16xf32>
    %123 = vector.shape_cast %122 : vector<1x32x16xf32> to vector<32x16xf32>
    %cst_63 = arith.constant dense<0.000000e+00> : vector<16x16xf32>
    %124 = tpu.matmul %121, %123, %cst_63 {dimension_numbers = #tpu.dot_dimension_numbers<[1], [0], [0], [1], [0, 0, 1, 1], [], []>} : vector<16x32xf32>, vector<32x16xf32>, vector<16x16xf32> -> vector<16x16xf32>
    %125 = arith.addf %119, %124 : vector<16x16xf32>
    %c0_64 = arith.constant 0 : index
    %c0_65 = arith.constant 0 : index
    %126 = vector.load %arg5[%c0_64, %c0_65] : memref<16x16xf32, #tpu.memory_space<vmem>>, vector<16x16xf32>
    %cst_66 = arith.constant dense<0.000000e+00> : vector<16x32xf32>
    %127 = tpu.matmul %126, %121, %cst_66 {dimension_numbers = #tpu.dot_dimension_numbers<[1], [0], [0], [1], [0, 0, 1, 1], [], []>} : vector<16x16xf32>, vector<16x32xf32>, vector<16x32xf32> -> vector<16x32xf32>
    %cst_67 = arith.constant 2.000000e+00 : f32
    %128 = vector.broadcast %cst_67 : f32 to vector<16x32xf32>
    %129 = arith.mulf %128, %127 : vector<16x32xf32>
    %130 = arith.subf %129, %116 : vector<16x32xf32>
    %c2_68 = arith.constant 2 : index
    %c0_69 = arith.constant 0 : index
    %c0_70 = arith.constant 0 : index
    %131 = vector.load %arg6[%c2_68, %c0_69, %c0_70] : memref<3x32x16xf32, #tpu.memory_space<vmem>>, vector<1x32x16xf32>
    %132 = vector.shape_cast %131 : vector<1x32x16xf32> to vector<32x16xf32>
    %cst_71 = arith.constant dense<0.000000e+00> : vector<16x16xf32>
    %133 = tpu.matmul %130, %132, %cst_71 {dimension_numbers = #tpu.dot_dimension_numbers<[1], [0], [0], [1], [0, 0, 1, 1], [], []>} : vector<16x32xf32>, vector<32x16xf32>, vector<16x16xf32> -> vector<16x16xf32>
    %134 = arith.addf %125, %133 : vector<16x16xf32>
    %c0_72 = arith.constant 0 : index
    %c0_73 = arith.constant 0 : index
    %135 = vector.load %arg7[%c0_72, %c0_73] : memref<1x16xf32, #tpu.memory_space<vmem>>, vector<1x16xf32>
    %136 = vector.broadcast %135 : vector<1x16xf32> to vector<16x16xf32>
    %137 = arith.addf %134, %136 : vector<16x16xf32>
    %cst_74 = arith.constant 0.000000e+00 : f32
    %138 = vector.broadcast %cst_74 : f32 to vector<16x16xf32>
    %139 = arith.maximumf %137, %138 : vector<16x16xf32>
    %c0_75 = arith.constant 0 : index
    %c0_76 = arith.constant 0 : index
    %140 = vector.load %arg8[%c0_75, %c0_76] : memref<32x16xf32, #tpu.memory_space<vmem>>, vector<32x16xf32>
    %cst_77 = arith.constant dense<0.000000e+00> : vector<32x16xf32>
    %141 = tpu.matmul %140, %139, %cst_77 {dimension_numbers = #tpu.dot_dimension_numbers<[1], [0], [0], [1], [0, 0, 1, 1], [], []>} : vector<32x16xf32>, vector<16x16xf32>, vector<32x16xf32> -> vector<32x16xf32>
    %c0_78 = arith.constant 0 : index
    %c0_79 = arith.constant 0 : index
    %c0_80 = arith.constant 0 : index
    %142 = vector.load %arg10[%c0_78, %c0_79, %c0_80] : memref<3x16x16xf32, #tpu.memory_space<vmem>>, vector<1x16x16xf32>
    %143 = vector.shape_cast %142 : vector<1x16x16xf32> to vector<16x16xf32>
    %cst_81 = arith.constant dense<0.000000e+00> : vector<32x16xf32>
    %144 = tpu.matmul %141, %143, %cst_81 {dimension_numbers = #tpu.dot_dimension_numbers<[1], [0], [0], [1], [0, 0, 1, 1], [], []>} : vector<32x16xf32>, vector<16x16xf32>, vector<32x16xf32> -> vector<32x16xf32>
    %c0_82 = arith.constant 0 : index
    %c0_83 = arith.constant 0 : index
    %145 = vector.load %arg9[%c0_82, %c0_83] : memref<32x32xf32, #tpu.memory_space<vmem>>, vector<32x32xf32>
    %cst_84 = arith.constant dense<0.000000e+00> : vector<32x16xf32>
    %146 = tpu.matmul %145, %141, %cst_84 {dimension_numbers = #tpu.dot_dimension_numbers<[1], [0], [0], [1], [0, 0, 1, 1], [], []>} : vector<32x32xf32>, vector<32x16xf32>, vector<32x16xf32> -> vector<32x16xf32>
    %c1_85 = arith.constant 1 : index
    %c0_86 = arith.constant 0 : index
    %c0_87 = arith.constant 0 : index
    %147 = vector.load %arg10[%c1_85, %c0_86, %c0_87] : memref<3x16x16xf32, #tpu.memory_space<vmem>>, vector<1x16x16xf32>
    %148 = vector.shape_cast %147 : vector<1x16x16xf32> to vector<16x16xf32>
    %cst_88 = arith.constant dense<0.000000e+00> : vector<32x16xf32>
    %149 = tpu.matmul %146, %148, %cst_88 {dimension_numbers = #tpu.dot_dimension_numbers<[1], [0], [0], [1], [0, 0, 1, 1], [], []>} : vector<32x16xf32>, vector<16x16xf32>, vector<32x16xf32> -> vector<32x16xf32>
    %150 = arith.addf %144, %149 : vector<32x16xf32>
    %c0_89 = arith.constant 0 : index
    %c0_90 = arith.constant 0 : index
    %151 = vector.load %arg9[%c0_89, %c0_90] : memref<32x32xf32, #tpu.memory_space<vmem>>, vector<32x32xf32>
    %cst_91 = arith.constant dense<0.000000e+00> : vector<32x16xf32>
    %152 = tpu.matmul %151, %146, %cst_91 {dimension_numbers = #tpu.dot_dimension_numbers<[1], [0], [0], [1], [0, 0, 1, 1], [], []>} : vector<32x32xf32>, vector<32x16xf32>, vector<32x16xf32> -> vector<32x16xf32>
    %cst_92 = arith.constant 2.000000e+00 : f32
    %153 = vector.broadcast %cst_92 : f32 to vector<32x16xf32>
    %154 = arith.mulf %153, %152 : vector<32x16xf32>
    %155 = arith.subf %154, %141 : vector<32x16xf32>
    %c2_93 = arith.constant 2 : index
    %c0_94 = arith.constant 0 : index
    %c0_95 = arith.constant 0 : index
    %156 = vector.load %arg10[%c2_93, %c0_94, %c0_95] : memref<3x16x16xf32, #tpu.memory_space<vmem>>, vector<1x16x16xf32>
    %157 = vector.shape_cast %156 : vector<1x16x16xf32> to vector<16x16xf32>
    %cst_96 = arith.constant dense<0.000000e+00> : vector<32x16xf32>
    %158 = tpu.matmul %155, %157, %cst_96 {dimension_numbers = #tpu.dot_dimension_numbers<[1], [0], [0], [1], [0, 0, 1, 1], [], []>} : vector<32x16xf32>, vector<16x16xf32>, vector<32x16xf32> -> vector<32x16xf32>
    %159 = arith.addf %150, %158 : vector<32x16xf32>
    %c0_97 = arith.constant 0 : index
    %c0_98 = arith.constant 0 : index
    %160 = vector.load %arg11[%c0_97, %c0_98] : memref<1x16xf32, #tpu.memory_space<vmem>>, vector<1x16xf32>
    %161 = vector.broadcast %160 : vector<1x16xf32> to vector<32x16xf32>
    %162 = arith.addf %159, %161 : vector<32x16xf32>
    %cst_99 = arith.constant 0.000000e+00 : f32
    %163 = vector.broadcast %cst_99 : f32 to vector<32x16xf32>
    %164 = arith.maximumf %162, %163 : vector<32x16xf32>
    %c0_100 = arith.constant 0 : index
    %c0_101 = arith.constant 0 : index
    %165 = vector.load %arg12[%c0_100, %c0_101] : memref<64x32xf32, #tpu.memory_space<vmem>>, vector<64x32xf32>
    %cst_102 = arith.constant dense<0.000000e+00> : vector<64x16xf32>
    %166 = tpu.matmul %165, %164, %cst_102 {dimension_numbers = #tpu.dot_dimension_numbers<[1], [0], [0], [1], [0, 0, 1, 1], [], []>} : vector<64x32xf32>, vector<32x16xf32>, vector<64x16xf32> -> vector<64x16xf32>
    %c0_103 = arith.constant 0 : index
    %c0_104 = arith.constant 0 : index
    %c0_105 = arith.constant 0 : index
    %167 = vector.load %arg14[%c0_103, %c0_104, %c0_105] : memref<3x16x3xf32, #tpu.memory_space<vmem>>, vector<1x16x3xf32>
    %168 = vector.shape_cast %167 : vector<1x16x3xf32> to vector<16x3xf32>
    %cst_106 = arith.constant dense<0.000000e+00> : vector<64x3xf32>
    %169 = tpu.matmul %166, %168, %cst_106 {dimension_numbers = #tpu.dot_dimension_numbers<[1], [0], [0], [1], [0, 0, 1, 1], [], []>} : vector<64x16xf32>, vector<16x3xf32>, vector<64x3xf32> -> vector<64x3xf32>
    %c0_107 = arith.constant 0 : index
    %c0_108 = arith.constant 0 : index
    %170 = vector.load %arg13[%c0_107, %c0_108] : memref<64x64xf32, #tpu.memory_space<vmem>>, vector<64x64xf32>
    %cst_109 = arith.constant dense<0.000000e+00> : vector<64x16xf32>
    %171 = tpu.matmul %170, %166, %cst_109 {dimension_numbers = #tpu.dot_dimension_numbers<[1], [0], [0], [1], [0, 0, 1, 1], [], []>} : vector<64x64xf32>, vector<64x16xf32>, vector<64x16xf32> -> vector<64x16xf32>
    %c1_110 = arith.constant 1 : index
    %c0_111 = arith.constant 0 : index
    %c0_112 = arith.constant 0 : index
    %172 = vector.load %arg14[%c1_110, %c0_111, %c0_112] : memref<3x16x3xf32, #tpu.memory_space<vmem>>, vector<1x16x3xf32>
    %173 = vector.shape_cast %172 : vector<1x16x3xf32> to vector<16x3xf32>
    %cst_113 = arith.constant dense<0.000000e+00> : vector<64x3xf32>
    %174 = tpu.matmul %171, %173, %cst_113 {dimension_numbers = #tpu.dot_dimension_numbers<[1], [0], [0], [1], [0, 0, 1, 1], [], []>} : vector<64x16xf32>, vector<16x3xf32>, vector<64x3xf32> -> vector<64x3xf32>
    %175 = arith.addf %169, %174 : vector<64x3xf32>
    %c0_114 = arith.constant 0 : index
    %c0_115 = arith.constant 0 : index
    %176 = vector.load %arg13[%c0_114, %c0_115] : memref<64x64xf32, #tpu.memory_space<vmem>>, vector<64x64xf32>
    %cst_116 = arith.constant dense<0.000000e+00> : vector<64x16xf32>
    %177 = tpu.matmul %176, %171, %cst_116 {dimension_numbers = #tpu.dot_dimension_numbers<[1], [0], [0], [1], [0, 0, 1, 1], [], []>} : vector<64x64xf32>, vector<64x16xf32>, vector<64x16xf32> -> vector<64x16xf32>
    %cst_117 = arith.constant 2.000000e+00 : f32
    %178 = vector.broadcast %cst_117 : f32 to vector<64x16xf32>
    %179 = arith.mulf %178, %177 : vector<64x16xf32>
    %180 = arith.subf %179, %166 : vector<64x16xf32>
    %c2_118 = arith.constant 2 : index
    %c0_119 = arith.constant 0 : index
    %c0_120 = arith.constant 0 : index
    %181 = vector.load %arg14[%c2_118, %c0_119, %c0_120] : memref<3x16x3xf32, #tpu.memory_space<vmem>>, vector<1x16x3xf32>
    %182 = vector.shape_cast %181 : vector<1x16x3xf32> to vector<16x3xf32>
    %cst_121 = arith.constant dense<0.000000e+00> : vector<64x3xf32>
    %183 = tpu.matmul %180, %182, %cst_121 {dimension_numbers = #tpu.dot_dimension_numbers<[1], [0], [0], [1], [0, 0, 1, 1], [], []>} : vector<64x16xf32>, vector<16x3xf32>, vector<64x3xf32> -> vector<64x3xf32>
    %184 = arith.addf %175, %183 : vector<64x3xf32>
    %c0_122 = arith.constant 0 : index
    %c0_123 = arith.constant 0 : index
    %c0_124 = arith.constant 0 : index
    %185 = vector.load %arg15[%c0_122, %c0_123, %c0_124] : memref<1x64x3xf32, #tpu.memory_space<vmem>>, vector<1x64x3xf32>
    %186 = vector.shape_cast %185 : vector<1x64x3xf32> to vector<64x3xf32>
    %187 = vector.shape_cast %184 : vector<64x3xf32> to vector<1x64x3xf32>
    tpu.vector_store %arg15[%c0_122, %c0_123, %c0_124], %187 {strides = array<i32>} : memref<1x64x3xf32, #tpu.memory_space<vmem>>, vector<1x64x3xf32>,
    return
  }
  func.func @transform_0(%arg0: i32) -> (i32, i32) {
    %c0_i32 = arith.constant 0 : i32
    %c0_i32_0 = arith.constant 0 : i32
    %c0_i32_1 = arith.constant 0 : i32
    return %c0_i32, %c0_i32_0 : i32, i32
  }
  func.func @transform_1(%arg0: i32) -> (i32, i32, i32) {
    %c0_i32 = arith.constant 0 : i32
    %c0_i32_0 = arith.constant 0 : i32
    %c0_i32_1 = arith.constant 0 : i32
    %c0_i32_2 = arith.constant 0 : i32
    return %c0_i32, %c0_i32_0, %c0_i32_1 : i32, i32, i32
  }
  func.func @transform_2(%arg0: i32) -> (i32, i32) {
    %c0_i32 = arith.constant 0 : i32
    %c0_i32_0 = arith.constant 0 : i32
    %c0_i32_1 = arith.constant 0 : i32
    return %c0_i32, %c0_i32_0 : i32, i32
  }
  func.func @transform_3(%arg0: i32) -> (i32, i32) {
    %c0_i32 = arith.constant 0 : i32
    %c0_i32_0 = arith.constant 0 : i32
    %c0_i32_1 = arith.constant 0 : i32
    return %c0_i32, %c0_i32_0 : i32, i32
  }
  func.func @transform_4(%arg0: i32) -> (i32, i32) {
    %c0_i32 = arith.constant 0 : i32
    %c0_i32_0 = arith.constant 0 : i32
    %c0_i32_1 = arith.constant 0 : i32
    return %c0_i32, %c0_i32_0 : i32, i32
  }
  func.func @transform_5(%arg0: i32) -> (i32, i32, i32) {
    %c0_i32 = arith.constant 0 : i32
    %c0_i32_0 = arith.constant 0 : i32
    %c0_i32_1 = arith.constant 0 : i32
    %c0_i32_2 = arith.constant 0 : i32
    return %c0_i32, %c0_i32_0, %c0_i32_1 : i32, i32, i32
  }
  func.func @transform_6(%arg0: i32) -> (i32, i32) {
    %c0_i32 = arith.constant 0 : i32
    %c0_i32_0 = arith.constant 0 : i32
    %c0_i32_1 = arith.constant 0 : i32
    return %c0_i32, %c0_i32_0 : i32, i32
  }
  func.func @transform_7(%arg0: i32) -> (i32, i32) {
    %c0_i32 = arith.constant 0 : i32
    %c0_i32_0 = arith.constant 0 : i32
    %c0_i32_1 = arith.constant 0 : i32
    return %c0_i32, %c0_i32_0 : i32, i32
  }
  func.func @transform_8(%arg0: i32) -> (i32, i32) {
    %c0_i32 = arith.constant 0 : i32
    %c0_i32_0 = arith.constant 0 : i32
    %c0_i32_1 = arith.constant 0 : i32
    return %c0_i32, %c0_i32_0 : i32, i32
  }
  func.func @transform_9(%arg0: i32) -> (i32, i32, i32) {
    %c0_i32 = arith.constant 0 : i32
    %c0_i32_0 = arith.constant 0 : i32
    %c0_i32_1 = arith.constant 0 : i32
    %c0_i32_2 = arith.constant 0 : i32
    return %c0_i32, %c0_i32_0, %c0_i32_1 : i32, i32, i32
  }
  func.func @transform_10(%arg0: i32) -> (i32, i32) {
    %c0_i32 = arith.constant 0 : i32
    %c0_i32_0 = arith.constant 0 : i32
    %c0_i32_1 = arith.constant 0 : i32
    return %c0_i32, %c0_i32_0 : i32, i32
  }
  func.func @transform_11(%arg0: i32) -> (i32, i32) {
    %c0_i32 = arith.constant 0 : i32
    %c0_i32_0 = arith.constant 0 : i32
    %c0_i32_1 = arith.constant 0 : i32
    return %c0_i32, %c0_i32_0 : i32, i32
  }
  func.func @transform_12(%arg0: i32) -> (i32, i32) {
    %c0_i32 = arith.constant 0 : i32
    %c0_i32_0 = arith.constant 0 : i32
    %c0_i32_1 = arith.constant 0 : i32
    return %c0_i32, %c0_i32_0 : i32, i32
  }
  func.func @transform_13(%arg0: i32) -> (i32, i32, i32) {
    %c0_i32 = arith.constant 0 : i32
    %c0_i32_0 = arith.constant 0 : i32
    %c0_i32_1 = arith.constant 0 : i32
    %c0_i32_2 = arith.constant 0 : i32
    return %c0_i32, %c0_i32_0, %c0_i32_1 : i32, i32, i32
  }
  func.func @transform_14(%arg0: i32) -> (i32, i32, i32) {
    %c0_i32 = arith.constant 0 : i32
    %c0_i32_0 = arith.constant 0 : i32
    %c0_i32_1 = arith.constant 0 : i32
    return %arg0, %c0_i32, %c0_i32_0 : i32, i32, i32
  }
}

</mosaic_0001>

<llo_original>
// kernel: tpu_custom_call.1
$region0: #{tpu_custom_call.1}
  #allocation0 [shape = 'u32[]', space=smem, size = 0x4, offset = 0x4, fixed_abs, tag = 'smem constant byte address 0x4 - core index']
  #allocation1 [shape = 'u32[144,128]{1,0:T(1,128)}', space=vmem, size = 0x12000, scoped, tag = 'internal scratch']
  %s0 = inlined_call_operand.vmem [shape: f32[2,16], index: 0, kind: input, shape index: {}]
  %s1 = inlined_call_operand.vmem [shape: f32[16,8,32], index: 1, kind: input, shape index: {}]
  %s2 = inlined_call_operand.hbm [shape: f32[8,32], index: 2, kind: input, shape index: {}]
  %s3 = inlined_call_operand.vmem [shape: f32[16,8], index: 3, kind: input, shape index: {}]
  %s4 = inlined_call_operand.vmem [shape: f32[16,16], index: 4, kind: input, shape index: {}]
  %s5 = inlined_call_operand.vmem [shape: f32[3,32,16], index: 5, kind: input, shape index: {}]
  %s6 = inlined_call_operand.hbm [shape: f32[1,16], index: 6, kind: input, shape index: {}]
  %s7 = inlined_call_operand.vmem [shape: f32[32,16], index: 7, kind: input, shape index: {}]
  %s8 = inlined_call_operand.vmem [shape: f32[32,32], index: 8, kind: input, shape index: {}]
  %s9 = inlined_call_operand.vmem [shape: f32[3,16,16], index: 9, kind: input, shape index: {}]
  %s10 = inlined_call_operand.vmem [shape: f32[1,16], index: 10, kind: input, shape index: {}]
  %s11 = inlined_call_operand.vmem [shape: f32[64,32], index: 11, kind: input, shape index: {}]
  %s12 = inlined_call_operand.vmem [shape: f32[64,64], index: 12, kind: input, shape index: {}]
  %s13 = inlined_call_operand.vmem [shape: f32[3,16,3], index: 13, kind: input, shape index: {}]
  %s14 = inlined_call_operand.vmem [shape: f32[2,64,3], index: 14, kind: output, shape index: {}]
  %s15 = sld [smem:[#allocation0]]
  $region101: #{tpu_custom_call.1} parent=0
    _
  %s17 = ssub.s32 1, %s15
  %s18 = scalar_select 0, %s17, %s15
  $region1: #{tpu_custom_call.1} parent=0
    #allocation2 [shape = 'u8[1024]{0}', space=smem, size = 0x400, scoped, tag = 'input window, operand 0, single buffered']
    #allocation3 [shape = 's32[2]{0}', space=sflag, size = 0x8, scoped, tag = 'scoped memory for tpu_custom_call.1']
    #allocation4 [shape = 's32[2]{0}', space=sflag, size = 0x8, scoped, tag = 'scoped memory for tpu_custom_call.1']
    #allocation5 [shape = 'u8[4096]{0}', space=vmem, size = 0x1000, scoped, tag = 'input window, operand 2, single buffered']
    #allocation6 [shape = 'u8[512]{0}', space=vmem, size = 0x400, scoped, tag = 'input window, operand 6, single buffered']
    #allocation7 [shape = 's32[1]{0}', space=sflag, size = 0x4, scoped, tag = 'scoped memory for tpu_custom_call.1']
    %19 = vsyncpa [#allocation4], 0
    %20 = vsyncpa [#allocation3], 0
    %21 = vsyncpa [#allocation7], 0
    loop: start=0, step=1, limit=4
    $region2: #{tpu_custom_call.1} parent=1 // loop_pre_header
      _
    $region3: #{tpu_custom_call.1} parent=1 // loop_header
      %s23 = sphi 0, %s27
      %p24 = scmp.ge.s32.totalorder %s23, 4
      %s31 = sphi 0, %s31
      %s33 = sphi 0, %s31
      %s34 = sphi 0, %s33
      %s48 = sphi 0, %s34
      %s52 = sphi 0, %s52
      %s54 = sphi 0, %s52
      %s55 = sphi 0, %s54
      %s69 = sphi 0, %s55
      %s73 = sphi 0, %s73
      %s75 = sphi 0, %s73
      %s76 = sphi 0, %s75
      %s90 = sphi 0, %s76
      %s94 = sphi 0, %s94
      %s96 = sphi 0, %s94
      %s97 = sphi 0, %s96
      %s111 = sphi 0, %s97
      %s115 = sphi 0, %s115
      %s117 = sphi 0, %s115
      %s118 = sphi 0, %s117
      %s132 = sphi 0, %s118
      %s136 = sphi 0, %s136
      %s138 = sphi 0, %s136
      %s139 = sphi 0, %s138
      %s153 = sphi 0, %s139
      %s157 = sphi 0, %s157
      %s159 = sphi 0, %s157
      %s160 = sphi 0, %s159
      %s174 = sphi 0, %s160
      %s178 = sphi 0, %s178
      %s180 = sphi 0, %s178
      %s181 = sphi 0, %s180
      %s195 = sphi 0, %s181
      %s199 = sphi 0, %s199
      %s201 = sphi 0, %s199
      %s202 = sphi 0, %s201
      %s216 = sphi 0, %s202
      %s220 = sphi 0, %s220
      %s222 = sphi 0, %s220
      %s223 = sphi 0, %s222
      %s237 = sphi 0, %s223
      %s241 = sphi 0, %s241
      %s243 = sphi 0, %s241
      %s244 = sphi 0, %s243
      %s258 = sphi 0, %s244
      %s262 = sphi 0, %s262
      %s264 = sphi 0, %s262
      %s265 = sphi 0, %s264
      %s279 = sphi 0, %s265
      %s283 = sphi 0, %s283
      %s285 = sphi 0, %s283
      %s286 = sphi 0, %s285
      %s300 = sphi 0, %s286
      %s304 = sphi 0, %s304
      %s306 = sphi 0, %s304
      %s307 = sphi 0, %s306
      %s321 = sphi 0, %s307
      %s327 = sphi 0, %s329
      %s330 = sphi 0, %s327
      %s331 = sphi 0, %s330
      %s347 = sphi 0, %s331
    $region4: #{tpu_custom_call.1} parent=1 // loop_header_branch
      %26 = sbr.rel (%p24) target = $region8
    $region5: #{tpu_custom_call.1} parent=1 // loop_body
      %s28 = ssub.s32 %s23, 1
      %s29 = ssub.s32 %s23, 2
      %s30 = sadd.s32 %s23, 1
      %s32 = sadd.s32 %s31, 1
      %p35 = scmp.eq.s32.totalorder %s23, 1
      %p36 = scmp.ne.s32.totalorder %s31, %s33
      %p37 = scmp.eq.s32.totalorder %s23, 0
      %p38 = por %p36, %p37
      %p39 = scmp.ne.s32.totalorder %s31, %s33
      %p40 = scmp.eq.s32.totalorder %s28, 1
      %p41 = por %p39, %p40
      %p42 = scmp.ne.s32.totalorder %s33, %s34
      %p43 = scmp.eq.s32.totalorder %s28, 0
      %p44 = por %p42, %p43
      %p45 = scmp.ne.s32.totalorder %s33, %s34
      %p46 = scmp.eq.s32.totalorder %s29, 1
      %p47 = por %p45, %p46
      %p49 = scmp.ne.s32.totalorder %s34, %s48
      %p50 = scmp.eq.s32.totalorder %s29, 0
      %p51 = por %p49, %p50
      %s53 = sadd.s32 %s52, 1
      %p56 = scmp.eq.s32.totalorder %s23, 1
      %p57 = scmp.ne.s32.totalorder %s52, %s54
      %p58 = scmp.eq.s32.totalorder %s23, 0
      %p59 = por %p57, %p58
      %p60 = scmp.ne.s32.totalorder %s52, %s54
      %p61 = scmp.eq.s32.totalorder %s28, 1
      %p62 = por %p60, %p61
      %p63 = scmp.ne.s32.totalorder %s54, %s55
      %p64 = scmp.eq.s32.totalorder %s28, 0
      %p65 = por %p63, %p64
      %p66 = scmp.ne.s32.totalorder %s54, %s55
      %p67 = scmp.eq.s32.totalorder %s29, 1
      %p68 = por %p66, %p67
      %p70 = scmp.ne.s32.totalorder %s55, %s69
      %p71 = scmp.eq.s32.totalorder %s29, 0
      %p72 = por %p70, %p71
      %s74 = sadd.s32 %s73, 1
      %p77 = scmp.eq.s32.totalorder %s23, 1
      %p78 = scmp.ne.s32.totalorder %s73, %s75
      %p79 = scmp.eq.s32.totalorder %s23, 0
      %p80 = por %p78, %p79
      %p81 = scmp.ne.s32.totalorder %s73, %s75
      %p82 = scmp.eq.s32.totalorder %s28, 1
      %p83 = por %p81, %p82
      %p84 = scmp.ne.s32.totalorder %s75, %s76
      %p85 = scmp.eq.s32.totalorder %s28, 0
      %p86 = por %p84, %p85
      %p87 = scmp.ne.s32.totalorder %s75, %s76
      %p88 = scmp.eq.s32.totalorder %s29, 1
      %p89 = por %p87, %p88
      %p91 = scmp.ne.s32.totalorder %s76, %s90
      %p92 = scmp.eq.s32.totalorder %s29, 0
      %p93 = por %p91, %p92
      %s95 = sadd.s32 %s94, 1
      %p98 = scmp.eq.s32.totalorder %s23, 1
      %p99 = scmp.ne.s32.totalorder %s94, %s96
      %p100 = scmp.eq.s32.totalorder %s23, 0
      %p101 = por %p99, %p100
      %p102 = scmp.ne.s32.totalorder %s94, %s96
      %p103 = scmp.eq.s32.totalorder %s28, 1
      %p104 = por %p102, %p103
      %p105 = scmp.ne.s32.totalorder %s96, %s97
      %p106 = scmp.eq.s32.totalorder %s28, 0
      %p107 = por %p105, %p106
      %p108 = scmp.ne.s32.totalorder %s96, %s97
      %p109 = scmp.eq.s32.totalorder %s29, 1
      %p110 = por %p108, %p109
      %p112 = scmp.ne.s32.totalorder %s97, %s111
      %p113 = scmp.eq.s32.totalorder %s29, 0
      %p114 = por %p112, %p113
      %s116 = sadd.s32 %s115, 1
      %p119 = scmp.eq.s32.totalorder %s23, 1
      %p120 = scmp.ne.s32.totalorder %s115, %s117
      %p121 = scmp.eq.s32.totalorder %s23, 0
      %p122 = por %p120, %p121
      %p123 = scmp.ne.s32.totalorder %s115, %s117
      %p124 = scmp.eq.s32.totalorder %s28, 1
      %p125 = por %p123, %p124
      %p126 = scmp.ne.s32.totalorder %s117, %s118
      %p127 = scmp.eq.s32.totalorder %s28, 0
      %p128 = por %p126, %p127
      %p129 = scmp.ne.s32.totalorder %s117, %s118
      %p130 = scmp.eq.s32.totalorder %s29, 1
      %p131 = por %p129, %p130
      %p133 = scmp.ne.s32.totalorder %s118, %s132
      %p134 = scmp.eq.s32.totalorder %s29, 0
      %p135 = por %p133, %p134
      %s137 = sadd.s32 %s136, 1
      %p140 = scmp.eq.s32.totalorder %s23, 1
      %p141 = scmp.ne.s32.totalorder %s136, %s138
      %p142 = scmp.eq.s32.totalorder %s23, 0
      %p143 = por %p141, %p142
      %p144 = scmp.ne.s32.totalorder %s136, %s138
      %p145 = scmp.eq.s32.totalorder %s28, 1
      %p146 = por %p144, %p145
      %p147 = scmp.ne.s32.totalorder %s138, %s139
      %p148 = scmp.eq.s32.totalorder %s28, 0
      %p149 = por %p147, %p148
      %p150 = scmp.ne.s32.totalorder %s138, %s139
      %p151 = scmp.eq.s32.totalorder %s29, 1
      %p152 = por %p150, %p151
      %p154 = scmp.ne.s32.totalorder %s139, %s153
      %p155 = scmp.eq.s32.totalorder %s29, 0
      %p156 = por %p154, %p155
      %s158 = sadd.s32 %s157, 1
      %p161 = scmp.eq.s32.totalorder %s23, 1
      %p162 = scmp.ne.s32.totalorder %s157, %s159
      %p163 = scmp.eq.s32.totalorder %s23, 0
      %p164 = por %p162, %p163
      %p165 = scmp.ne.s32.totalorder %s157, %s159
      %p166 = scmp.eq.s32.totalorder %s28, 1
      %p167 = por %p165, %p166
      %p168 = scmp.ne.s32.totalorder %s159, %s160
      %p169 = scmp.eq.s32.totalorder %s28, 0
      %p170 = por %p168, %p169
      %p171 = scmp.ne.s32.totalorder %s159, %s160
      %p172 = scmp.eq.s32.totalorder %s29, 1
      %p173 = por %p171, %p172
      %p175 = scmp.ne.s32.totalorder %s160, %s174
      %p176 = scmp.eq.s32.totalorder %s29, 0
      %p177 = por %p175, %p176
      %s179 = sadd.s32 %s178, 1
      %p182 = scmp.eq.s32.totalorder %s23, 1
      %p183 = scmp.ne.s32.totalorder %s178, %s180
      %p184 = scmp.eq.s32.totalorder %s23, 0
      %p185 = por %p183, %p184
      %p186 = scmp.ne.s32.totalorder %s178, %s180
      %p187 = scmp.eq.s32.totalorder %s28, 1
      %p188 = por %p186, %p187
      %p189 = scmp.ne.s32.totalorder %s180, %s181
      %p190 = scmp.eq.s32.totalorder %s28, 0
      %p191 = por %p189, %p190
      %p192 = scmp.ne.s32.totalorder %s180, %s181
      %p193 = scmp.eq.s32.totalorder %s29, 1
      %p194 = por %p192, %p193
      %p196 = scmp.ne.s32.totalorder %s181, %s195
      %p197 = scmp.eq.s32.totalorder %s29, 0
      %p198 = por %p196, %p197
      %s200 = sadd.s32 %s199, 1
      %p203 = scmp.eq.s32.totalorder %s23, 1
      %p204 = scmp.ne.s32.totalorder %s199, %s201
      %p205 = scmp.eq.s32.totalorder %s23, 0
      %p206 = por %p204, %p205
      %p207 = scmp.ne.s32.totalorder %s199, %s201
      %p208 = scmp.eq.s32.totalorder %s28, 1
      %p209 = por %p207, %p208
      %p210 = scmp.ne.s32.totalorder %s201, %s202
      %p211 = scmp.eq.s32.totalorder %s28, 0
      %p212 = por %p210, %p211
      %p213 = scmp.ne.s32.totalorder %s201, %s202
      %p214 = scmp.eq.s32.totalorder %s29, 1
      %p215 = por %p213, %p214
      %p217 = scmp.ne.s32.totalorder %s202, %s216
      %p218 = scmp.eq.s32.totalorder %s29, 0
      %p219 = por %p217, %p218
      %s221 = sadd.s32 %s220, 1
      %p224 = scmp.eq.s32.totalorder %s23, 1
      %p225 = scmp.ne.s32.totalorder %s220, %s222
      %p226 = scmp.eq.s32.totalorder %s23, 0
      %p227 = por %p225, %p226
      %p228 = scmp.ne.s32.totalorder %s220, %s222
      %p229 = scmp.eq.s32.totalorder %s28, 1
      %p230 = por %p228, %p229
      %p231 = scmp.ne.s32.totalorder %s222, %s223
      %p232 = scmp.eq.s32.totalorder %s28, 0
      %p233 = por %p231, %p232
      %p234 = scmp.ne.s32.totalorder %s222, %s223
      %p235 = scmp.eq.s32.totalorder %s29, 1
      %p236 = por %p234, %p235
      %p238 = scmp.ne.s32.totalorder %s223, %s237
      %p239 = scmp.eq.s32.totalorder %s29, 0
      %p240 = por %p238, %p239
      %s242 = sadd.s32 %s241, 1
      %p245 = scmp.eq.s32.totalorder %s23, 1
      %p246 = scmp.ne.s32.totalorder %s241, %s243
      %p247 = scmp.eq.s32.totalorder %s23, 0
      %p248 = por %p246, %p247
      %p249 = scmp.ne.s32.totalorder %s241, %s243
      %p250 = scmp.eq.s32.totalorder %s28, 1
      %p251 = por %p249, %p250
      %p252 = scmp.ne.s32.totalorder %s243, %s244
      %p253 = scmp.eq.s32.totalorder %s28, 0
      %p254 = por %p252, %p253
      %p255 = scmp.ne.s32.totalorder %s243, %s244
      %p256 = scmp.eq.s32.totalorder %s29, 1
      %p257 = por %p255, %p256
      %p259 = scmp.ne.s32.totalorder %s244, %s258
      %p260 = scmp.eq.s32.totalorder %s29, 0
      %p261 = por %p259, %p260
      %s263 = sadd.s32 %s262, 1
      %p266 = scmp.eq.s32.totalorder %s23, 1
      %p267 = scmp.ne.s32.totalorder %s262, %s264
      %p268 = scmp.eq.s32.totalorder %s23, 0
      %p269 = por %p267, %p268
      %p270 = scmp.ne.s32.totalorder %s262, %s264
      %p271 = scmp.eq.s32.totalorder %s28, 1
      %p272 = por %p270, %p271
      %p273 = scmp.ne.s32.totalorder %s264, %s265
      %p274 = scmp.eq.s32.totalorder %s28, 0
      %p275 = por %p273, %p274
      %p276 = scmp.ne.s32.totalorder %s264, %s265
      %p277 = scmp.eq.s32.totalorder %s29, 1
      %p278 = por %p276, %p277
      %p280 = scmp.ne.s32.totalorder %s265, %s279
      %p281 = scmp.eq.s32.totalorder %s29, 0
      %p282 = por %p280, %p281
      %s284 = sadd.s32 %s283, 1
      %p287 = scmp.eq.s32.totalorder %s23, 1
      %p288 = scmp.ne.s32.totalorder %s283, %s285
      %p289 = scmp.eq.s32.totalorder %s23, 0
      %p290 = por %p288, %p289
      %p291 = scmp.ne.s32.totalorder %s283, %s285
      %p292 = scmp.eq.s32.totalorder %s28, 1
      %p293 = por %p291, %p292
      %p294 = scmp.ne.s32.totalorder %s285, %s286
      %p295 = scmp.eq.s32.totalorder %s28, 0
      %p296 = por %p294, %p295
      %p297 = scmp.ne.s32.totalorder %s285, %s286
      %p298 = scmp.eq.s32.totalorder %s29, 1
      %p299 = por %p297, %p298
      %p301 = scmp.ne.s32.totalorder %s286, %s300
      %p302 = scmp.eq.s32.totalorder %s29, 0
      %p303 = por %p301, %p302
      %s305 = sadd.s32 %s304, 1
      %p308 = scmp.eq.s32.totalorder %s23, 1
      %p309 = scmp.ne.s32.totalorder %s304, %s306
      %p310 = scmp.eq.s32.totalorder %s23, 0
      %p311 = por %p309, %p310
      %p312 = scmp.ne.s32.totalorder %s304, %s306
      %p313 = scmp.eq.s32.totalorder %s28, 1
      %p314 = por %p312, %p313
      %p315 = scmp.ne.s32.totalorder %s306, %s307
      %p316 = scmp.eq.s32.totalorder %s28, 0
      %p317 = por %p315, %p316
      %p318 = scmp.ne.s32.totalorder %s306, %s307
      %p319 = scmp.eq.s32.totalorder %s29, 1
      %p320 = por %p318, %p319
      %p322 = scmp.ne.s32.totalorder %s307, %s321
      %p323 = scmp.eq.s32.totalorder %s29, 0
      %p324 = por %p322, %p323
      %s325 = ssub.s32 %s23, %s30
      %p326 = scmp.eq.s32.totalorder %s325, 0
      %s328 = sadd.s32 %s327, 1
      %s329 = scalar_select %p326, %s327, %s328
      %p332 = pneg %p326
      %p333 = scmp.eq.s32.totalorder %s23, 1
      %p334 = por %p332, %p333
      %p335 = scmp.ne.s32.totalorder %s327, %s330
      %p336 = scmp.eq.s32.totalorder %s23, 0
      %p337 = por %p335, %p336
      %p338 = scmp.ne.s32.totalorder %s327, %s330
      %p339 = scmp.eq.s32.totalorder %s28, 1
      %p340 = por %p338, %p339
      %p341 = scmp.ne.s32.totalorder %s330, %s331
      %p342 = scmp.eq.s32.totalorder %s28, 0
      %p343 = por %p341, %p342
      %p344 = scmp.ne.s32.totalorder %s330, %s331
      %p345 = scmp.eq.s32.totalorder %s29, 1
      %p346 = por %p344, %p345
      %p348 = scmp.ne.s32.totalorder %s331, %s347
      %p349 = scmp.eq.s32.totalorder %s29, 0
      %p350 = por %p348, %p349
      %p351 = scmp.le.s32.totalorder 1, %s23
      %p352 = scmp.lt.s32.totalorder %s23, 3
      %p353 = pnand %p351, %p352
      %p354 = pneg %p353
      // Predicated region
      $region9: #{tpu_custom_call.1} parent=5 // pred_check
        _
      $region10: #{tpu_custom_call.1} parent=5 // pred_check_branch
        %356 = sbr.rel (%p353) target = $region12
      $region11: #{tpu_custom_call.1} parent=5 // pred_region
        %s357 = ssub.s32 %s23, 1
        // Predicated region
        $region13: #{tpu_custom_call.1} parent=11 // pred_check
          %p358 = pneg %p44
        $region14: #{tpu_custom_call.1} parent=11 // pred_check_branch
          %360 = sbr.rel (%p358) target = $region16
        $region15: #{tpu_custom_call.1} parent=11 // pred_region
          %s362 = ssub.s32 32, 32
          %363 = vsyncadd [#allocation4], %s362
          %s365 = sshll.u32 %s0, 4
          %s366 = int_to_ptr.vmem [resolvable:$true] %s365
          %368 = dma.vmem_to_smem %s366, 32, [#allocation2], [#allocation4]
        $region16: #{tpu_custom_call.1} parent=11 // pred_fallthru
          _
        // Predicated region
        $region17: #{tpu_custom_call.1} parent=11 // pred_check
          %p369 = pneg %p65
        $region18: #{tpu_custom_call.1} parent=11 // pred_check_branch
          %371 = sbr.rel (%p369) target = $region20
        $region19: #{tpu_custom_call.1} parent=11 // pred_region
          _
        $region20: #{tpu_custom_call.1} parent=11 // pred_fallthru
          _
        // Predicated region
        $region21: #{tpu_custom_call.1} parent=11 // pred_check
          %p372 = pneg %p86
        $region22: #{tpu_custom_call.1} parent=11 // pred_check_branch
          %374 = sbr.rel (%p372) target = $region24
        $region23: #{tpu_custom_call.1} parent=11 // pred_region
          %s376 = ssub.s32 128, 128
          %377 = vsyncadd [#allocation3], %s376
          %s379 = sshll.u32 [#allocation5], 4
          %s380 = int_to_ptr.vmem [resolvable:$true] %s379
          %382 = dma.hbm_to_vmem [thread:$0]  %s2, 128, %s380, [#allocation3]
        $region24: #{tpu_custom_call.1} parent=11 // pred_fallthru
          _
        // Predicated region
        $region25: #{tpu_custom_call.1} parent=11 // pred_check
          %p383 = pneg %p107
        $region26: #{tpu_custom_call.1} parent=11 // pred_check_branch
          %385 = sbr.rel (%p383) target = $region28
        $region27: #{tpu_custom_call.1} parent=11 // pred_region
          _
        $region28: #{tpu_custom_call.1} parent=11 // pred_fallthru
          _
        // Predicated region
        $region29: #{tpu_custom_call.1} parent=11 // pred_check
          %p386 = pneg %p128
        $region30: #{tpu_custom_call.1} parent=11 // pred_check_branch
          %388 = sbr.rel (%p386) target = $region32
        $region31: #{tpu_custom_call.1} parent=11 // pred_region
          _
        $region32: #{tpu_custom_call.1} parent=11 // pred_fallthru
          _
        // Predicated region
        $region33: #{tpu_custom_call.1} parent=11 // pred_check
          %p389 = pneg %p149
        $region34: #{tpu_custom_call.1} parent=11 // pred_check_branch
          %391 = sbr.rel (%p389) target = $region36
        $region35: #{tpu_custom_call.1} parent=11 // pred_region
          _
        $region36: #{tpu_custom_call.1} parent=11 // pred_fallthru
          _
        // Predicated region
        $region37: #{tpu_custom_call.1} parent=11 // pred_check
          %p392 = pneg %p170
        $region38: #{tpu_custom_call.1} parent=11 // pred_check_branch
          %394 = sbr.rel (%p392) target = $region40
        $region39: #{tpu_custom_call.1} parent=11 // pred_region
          %s396 = ssub.s32 16, 16
          %397 = vsyncadd [#allocation7], %s396
          %s399 = sshll.u32 [#allocation6], 4
          %s400 = int_to_ptr.vmem [resolvable:$true] %s399
          %402 = dma.hbm_to_vmem [thread:$0]  %s6, 16, %s400, [#allocation7]
        $region40: #{tpu_custom_call.1} parent=11 // pred_fallthru
          _
        // Predicated region
        $region41: #{tpu_custom_call.1} parent=11 // pred_check
          %p403 = pneg %p191
        $region42: #{tpu_custom_call.1} parent=11 // pred_check_branch
          %405 = sbr.rel (%p403) target = $region44
        $region43: #{tpu_custom_call.1} parent=11 // pred_region
          _
        $region44: #{tpu_custom_call.1} parent=11 // pred_fallthru
          _
        // Predicated region
        $region45: #{tpu_custom_call.1} parent=11 // pred_check
          %p406 = pneg %p212
        $region46: #{tpu_custom_call.1} parent=11 // pred_check_branch
          %408 = sbr.rel (%p406) target = $region48
        $region47: #{tpu_custom_call.1} parent=11 // pred_region
          _
        $region48: #{tpu_custom_call.1} parent=11 // pred_fallthru
          _
        // Predicated region
        $region49: #{tpu_custom_call.1} parent=11 // pred_check
          %p409 = pneg %p233
        $region50: #{tpu_custom_call.1} parent=11 // pred_check_branch
          %411 = sbr.rel (%p409) target = $region52
        $region51: #{tpu_custom_call.1} parent=11 // pred_region
          _
        $region52: #{tpu_custom_call.1} parent=11 // pred_fallthru
          _
        // Predicated region
        $region53: #{tpu_custom_call.1} parent=11 // pred_check
          %p412 = pneg %p254
        $region54: #{tpu_custom_call.1} parent=11 // pred_check_branch
          %414 = sbr.rel (%p412) target = $region56
        $region55: #{tpu_custom_call.1} parent=11 // pred_region
          _
        $region56: #{tpu_custom_call.1} parent=11 // pred_fallthru
          _
        // Predicated region
        $region57: #{tpu_custom_call.1} parent=11 // pred_check
          %p415 = pneg %p275
        $region58: #{tpu_custom_call.1} parent=11 // pred_check_branch
          %417 = sbr.rel (%p415) target = $region60
        $region59: #{tpu_custom_call.1} parent=11 // pred_region
          _
        $region60: #{tpu_custom_call.1} parent=11 // pred_fallthru
          _
        // Predicated region
        $region61: #{tpu_custom_call.1} parent=11 // pred_check
          %p418 = pneg %p296
        $region62: #{tpu_custom_call.1} parent=11 // pred_check_branch
          %420 = sbr.rel (%p418) target = $region64
        $region63: #{tpu_custom_call.1} parent=11 // pred_region
          _
        $region64: #{tpu_custom_call.1} parent=11 // pred_fallthru
          _
        // Predicated region
        $region65: #{tpu_custom_call.1} parent=11 // pred_check
          %p421 = pneg %p317
        $region66: #{tpu_custom_call.1} parent=11 // pred_check_branch
          %423 = sbr.rel (%p421) target = $region68
        $region67: #{tpu_custom_call.1} parent=11 // pred_region
          _
        $region68: #{tpu_custom_call.1} parent=11 // pred_fallthru
          _
      $region12: #{tpu_custom_call.1} parent=5 // pred_fallthru
        _
      %p424 = scmp.lt.s32.totalorder %s23, 2
      // Predicated region
      $region69: #{tpu_custom_call.1} parent=5 // pred_check
        %p425 = pneg %p424
      $region70: #{tpu_custom_call.1} parent=5 // pred_check_branch
        %427 = sbr.rel (%p425) target = $region72
      $region71: #{tpu_custom_call.1} parent=5 // pred_region
        _
      $region72: #{tpu_custom_call.1} parent=5 // pred_fallthru
        _
      %p428 = scmp.le.s32.totalorder 1, %s23
      %p429 = scmp.lt.s32.totalorder %s23, 3
      %p430 = pnand %p428, %p429
      %p431 = pneg %p430
      // Predicated region
      $region73: #{tpu_custom_call.1} parent=5 // pred_check
        _
      $region74: #{tpu_custom_call.1} parent=5 // pred_check_branch
        %433 = sbr.rel (%p430) target = $region76
      $region75: #{tpu_custom_call.1} parent=5 // pred_region
        %s434 = ssub.s32 %s23, 1
        // Predicated region
        $region77: #{tpu_custom_call.1} parent=75 // pred_check
          %p435 = pneg %p44
        $region78: #{tpu_custom_call.1} parent=75 // pred_check_branch
          %437 = sbr.rel (%p435) target = $region80
        $region79: #{tpu_custom_call.1} parent=75 // pred_region
          %438 = dma.done [#allocation4], 32
        $region80: #{tpu_custom_call.1} parent=75 // pred_fallthru
          _
        // Predicated region
        $region81: #{tpu_custom_call.1} parent=75 // pred_check
          %p439 = pneg %p86
        $region82: #{tpu_custom_call.1} parent=75 // pred_check_branch
          %441 = sbr.rel (%p439) target = $region84
        $region83: #{tpu_custom_call.1} parent=75 // pred_region
          %442 = dma.done [#allocation3], 128
        $region84: #{tpu_custom_call.1} parent=75 // pred_fallthru
          _
        // Predicated region
        $region85: #{tpu_custom_call.1} parent=75 // pred_check
          %p443 = pneg %p170
        $region86: #{tpu_custom_call.1} parent=75 // pred_check_branch
          %445 = sbr.rel (%p443) target = $region88
        $region87: #{tpu_custom_call.1} parent=75 // pred_region
          %446 = dma.done [#allocation7], 16
        $region88: #{tpu_custom_call.1} parent=75 // pred_fallthru
          _
        %447 = sfence
        %p448 = pneg %p44
        %p449 = pneg %p41
        %p450 = pneg %p65
        %p451 = pneg %p62
        %p452 = pneg %p86
        %p453 = pneg %p83
        %p454 = pneg %p107
        %p455 = pneg %p104
        %p456 = pneg %p128
        %p457 = pneg %p125
        %p458 = pneg %p149
        %p459 = pneg %p146
        %p460 = pneg %p170
        %p461 = pneg %p167
        %p462 = pneg %p191
        %p463 = pneg %p188
        %p464 = pneg %p212
        %p465 = pneg %p209
        %p466 = pneg %p233
        %p467 = pneg %p230
        %p468 = pneg %p254
        %p469 = pneg %p251
        %p470 = pneg %p275
        %p471 = pneg %p272
        %p472 = pneg %p296
        %p473 = pneg %p293
        %p474 = pneg %p317
        %p475 = pneg %p314
        %p476 = pneg %p343
        %p477 = pneg %p340
        %p478 = scmp.lt.s32.totalorder %s28, 1
        %s479 = scalar_select %p478, %s28, 1
        %s480 = smul.addr %s479, 8
        %s481 = smul.addr %s480, 8
        %s482 = scalar_lea.vmem %s14, %s481
        %p483 = scmp.lt.s32.totalorder %s28, 1
        %s484 = scalar_select %p483, %s28, 1
        %s485 = smul.addr %s484, 8
        %s486 = smul.addr %s485, 8
        %s487 = scalar_lea.vmem %s14, %s486
        %v488 = vld [vmem:[#allocation5] sm:$0xff]
        %s489 = smul.u32 %s28, 128
        %s490 = sld [smem:[#allocation2 + %s489]]
        %v491 = vld [vmem:[%s1] sm:$0xff]
        %v492 = vstv %s490
        %v493 = vmul.f32 %v492, %v491
        %v494 = vadd.f32 %v488, %v493
        %s495 = sadd.s32 %s489, 1
        %s496 = sld [smem:[#allocation2 + %s495]]
        %s497 = scalar_lea.vmem %s1, 8
        %v498 = vld [vmem:[%s497] sm:$0xff]
        %v499 = vstv %s496
        %v500 = vmul.f32 %v499, %v498
        %v501 = vadd.f32 %v494, %v500
        %s502 = sadd.s32 %s489, 2
        %s503 = sld [smem:[#allocation2 + %s502]]
        %s504 = scalar_lea.vmem %s1, 16
        %v505 = vld [vmem:[%s504] sm:$0xff]
        %v506 = vstv %s503
        %v507 = vmul.f32 %v506, %v505
        %v508 = vadd.f32 %v501, %v507
        %s509 = sadd.s32 %s489, 3
        %s510 = sld [smem:[#allocation2 + %s509]]
        %s511 = scalar_lea.vmem %s1, 24
        %v512 = vld [vmem:[%s511] sm:$0xff]
        %v513 = vstv %s510
        %v514 = vmul.f32 %v513, %v512
        %v515 = vadd.f32 %v508, %v514
        %s516 = sadd.s32 %s489, 4
        %s517 = sld [smem:[#allocation2 + %s516]]
        %s518 = scalar_lea.vmem %s1, 32
        %v519 = vld [vmem:[%s518] sm:$0xff]
        %v520 = vstv %s517
        %v521 = vmul.f32 %v520, %v519
        %v522 = vadd.f32 %v515, %v521
        %s523 = sadd.s32 %s489, 5
        %s524 = sld [smem:[#allocation2 + %s523]]
        %s525 = scalar_lea.vmem %s1, 40
        %v526 = vld [vmem:[%s525] sm:$0xff]
        %v527 = vstv %s524
        %v528 = vmul.f32 %v527, %v526
        %v529 = vadd.f32 %v522, %v528
        %s530 = sadd.s32 %s489, 6
        %s531 = sld [smem:[#allocation2 + %s530]]
        %s532 = scalar_lea.vmem %s1, 48
        %v533 = vld [vmem:[%s532] sm:$0xff]
        %v534 = vstv %s531
        %v535 = vmul.f32 %v534, %v533
        %v536 = vadd.f32 %v529, %v535
        %s537 = sadd.s32 %s489, 7
        %s538 = sld [smem:[#allocation2 + %s537]]
        %s539 = scalar_lea.vmem %s1, 56
        %v540 = vld [vmem:[%s539] sm:$0xff]
        %v541 = vstv %s538
        %v542 = vmul.f32 %v541, %v540
        %v543 = vadd.f32 %v536, %v542
        %s544 = sadd.s32 %s489, 8
        %s545 = sld [smem:[#allocation2 + %s544]]
        %s546 = scalar_lea.vmem %s1, 64
        %v547 = vld [vmem:[%s546] sm:$0xff]
        %v548 = vstv %s545
        %v549 = vmul.f32 %v548, %v547
        %v550 = vadd.f32 %v543, %v549
        %s551 = sadd.s32 %s489, 9
        %s552 = sld [smem:[#allocation2 + %s551]]
        %s553 = scalar_lea.vmem %s1, 72
        %v554 = vld [vmem:[%s553] sm:$0xff]
        %v555 = vstv %s552
        %v556 = vmul.f32 %v555, %v554
        %v557 = vadd.f32 %v550, %v556
        %s558 = sadd.s32 %s489, 10
        %s559 = sld [smem:[#allocation2 + %s558]]
        %s560 = scalar_lea.vmem %s1, 80
        %v561 = vld [vmem:[%s560] sm:$0xff]
        %v562 = vstv %s559
        %v563 = vmul.f32 %v562, %v561
        %v564 = vadd.f32 %v557, %v563
        %s565 = sadd.s32 %s489, 11
        %s566 = sld [smem:[#allocation2 + %s565]]
        %s567 = scalar_lea.vmem %s1, 88
        %v568 = vld [vmem:[%s567] sm:$0xff]
        %v569 = vstv %s566
        %v570 = vmul.f32 %v569, %v568
        %v571 = vadd.f32 %v564, %v570
        %s572 = sadd.s32 %s489, 12
        %s573 = sld [smem:[#allocation2 + %s572]]
        %s574 = scalar_lea.vmem %s1, 96
        %v575 = vld [vmem:[%s574] sm:$0xff]
        %v576 = vstv %s573
        %v577 = vmul.f32 %v576, %v575
        %v578 = vadd.f32 %v571, %v577
        %s579 = sadd.s32 %s489, 13
        %s580 = sld [smem:[#allocation2 + %s579]]
        %s581 = scalar_lea.vmem %s1, 104
        %v582 = vld [vmem:[%s581] sm:$0xff]
        %v583 = vstv %s580
        %v584 = vmul.f32 %v583, %v582
        %v585 = vadd.f32 %v578, %v584
        %s586 = sadd.s32 %s489, 14
        %s587 = sld [smem:[#allocation2 + %s586]]
        %s588 = scalar_lea.vmem %s1, 112
        %v589 = vld [vmem:[%s588] sm:$0xff]
        %v590 = vstv %s587
        %v591 = vmul.f32 %v590, %v589
        %v592 = vadd.f32 %v585, %v591
        %s593 = sadd.s32 %s489, 15
        %s594 = sld [smem:[#allocation2 + %s593]]
        %s595 = scalar_lea.vmem %s1, 120
        %v596 = vld [vmem:[%s595] sm:$0xff]
        %v597 = vstv %s594
        %v598 = vmul.f32 %v597, %v596
        %v599 = vadd.f32 %v592, %v598
        %v600 = vmax.f32 %v599, 0.0
        %v601 = vld [vmem:[%s3] sm:$0xff]
        %v602 = vld [vmem:[%s3 + $0x8] sm:$0xff]
        %vm603 = vcmask 64512
        %v605 = vsel %vm603, %v601, 0
        %v608 = vsel %vm603, %v602, 0
        %610 = vmatprep.subr.mxu0 0.0
        %611 = vmatpush1.msra.mxu0 %v600
        %612 = vmatprep.subr.mxu0 0.0
        %613 = vmatpush1.msra.mxu0 0.0
        %614 = vmatprep.subr.mxu0 0.0
        %615 = vmatpush1.msra.mxu0 0.0
        %616 = vmatprep.subr.mxu0 0.0
        %617 = vmatpush1.msra.mxu0 0.0
        %618 = vmatprep.subr.mxu0 0.0
        %619 = vmatpush1.msra.mxu0 0.0
        %620 = vmatprep.subr.mxu0 0.0
        %621 = vmatpush1.msra.mxu0 0.0
        %622 = vmatprep.subr.mxu0 0.0
        %623 = vmatpush1.msra.mxu0 0.0
        %624 = vmatprep.subr.mxu0 0.0
        %625 = vmatpush1.msra.mxu0 0.0
        %626 = vmatprep.subr.mxu0 0.0
        %627 = vmatpush1.msra.mxu0 0.0
        %628 = vmatprep.subr.mxu0 0.0
        %629 = vmatpush1.msra.mxu0 0.0
        %630 = vmatprep.subr.mxu0 0.0
        %631 = vmatpush1.msra.mxu0 0.0
        %632 = vmatprep.subr.mxu0 0.0
        %633 = vmatpush1.msra.mxu0 0.0
        %634 = vmatprep.subr.mxu0 0.0
        %635 = vmatpush1.msra.mxu0 0.0
        %636 = vmatprep.subr.mxu0 0.0
        %637 = vmatpush1.msra.mxu0 0.0
        %638 = vmatprep.subr.mxu0 0.0
        %639 = vmatpush1.msra.mxu0 0.0
        %640 = vmatprep.subr.mxu0 0.0
        %641 = vmatpush1.msra.mxu0 0.0
        %642 = vmatprep.subr.mxu0 0.0
        %643 = vmatpush1.msra.mxu0 0.0
        %644 = vmatprep.subr.mxu0 0.0
        %645 = vmatpush1.msra.mxu0 0.0
        %646 = vmatprep.subr.mxu0 0.0
        %647 = vmatpush1.msra.mxu0 0.0
        %648 = vmatprep.subr.mxu0 0.0
        %649 = vmatpush1.msra.mxu0 0.0
        %650 = vmatprep.subr.mxu0 0.0
        %651 = vmatpush1.msra.mxu0 0.0
        %652 = vmatprep.subr.mxu0 0.0
        %653 = vmatpush1.msra.mxu0 0.0
        %654 = vmatprep.subr.mxu0 0.0
        %655 = vmatpush1.msra.mxu0 0.0
        %656 = vmatprep.subr.mxu0 0.0
        %657 = vmatpush1.msra.mxu0 0.0
        %658 = vmatprep.subr.mxu0 0.0
        %659 = vmatpush1.msra.mxu0 0.0
        %660 = vmatprep.subr.mxu0 0.0
        %661 = vmatpush1.msra.mxu0 0.0
        %662 = vmatprep.subr.mxu0 0.0
        %663 = vmatpush1.msra.mxu0 0.0
        %664 = vmatprep.subr.mxu0 0.0
        %665 = vmatpush1.msra.mxu0 0.0
        %666 = vmatprep.subr.mxu0 0.0
        %667 = vmatpush1.msra.mxu0 0.0
        %668 = vmatprep.subr.mxu0 0.0
        %669 = vmatpush1.msra.mxu0 0.0
        %670 = vmatprep.subr.mxu0 0.0
        %671 = vmatpush1.msra.mxu0 0.0
        %672 = vmatprep.subr.mxu0 0.0
        %673 = vmatpush1.msra.mxu0 0.0
        %674 = vmatprep.mubr.f32.mxu0 0.0
        %675 = vmatmul.mubr.f32.gmra.mrb[0].mxu0 %v605
        %v676 = vpop.f32.mrb[0].mxu0
        %v677 = vadd.f32 0.0, %v676
        %v678 = vpop.f32.mrb[0].mxu0
        %679 = vmatprep.mubr.f32.mxu0 0.0
        %680 = vmatmul.mubr.f32.gmra.mrb[0].mxu0 %v608
        %v681 = vpop.f32.mrb[0].mxu0
        %v682 = vadd.f32 0.0, %v681
        %v683 = vpop.f32.mrb[0].mxu0
        %684 = vdwg.mxu0
        %v685 = vld [vmem:[%s5] sm:$0xff]
        %v686 = vld [vmem:[%s5 + $0x8] sm:$0xff]
        %v687 = vld [vmem:[%s5 + $0x10] sm:$0xff]
        %v688 = vld [vmem:[%s5 + $0x18] sm:$0xff]
        %v689 = vld [vmem:[%s4] sm:$0xff]
        %v690 = vld [vmem:[%s4 + $0x8] sm:$0xff]
        %vm691 = vcmask 130048
        %v693 = vsel %vm691, %v689, 0
        %v696 = vsel %vm691, %v690, 0
        %698 = vmatprep.subr.mxu0 0.0
        %699 = vmatpush1.msra.mxu0 %v677
        %700 = vmatprep.subr.mxu0 0.0
        %701 = vmatpush1.msra.mxu0 %v682
        %702 = vmatprep.subr.mxu0 0.0
        %703 = vmatpush1.msra.mxu0 0.0
        %704 = vmatprep.subr.mxu0 0.0
        %705 = vmatpush1.msra.mxu0 0.0
        %706 = vmatprep.subr.mxu0 0.0
        %707 = vmatpush1.msra.mxu0 0.0
        %708 = vmatprep.subr.mxu0 0.0
        %709 = vmatpush1.msra.mxu0 0.0
        %710 = vmatprep.subr.mxu0 0.0
        %711 = vmatpush1.msra.mxu0 0.0
        %712 = vmatprep.subr.mxu0 0.0
        %713 = vmatpush1.msra.mxu0 0.0
        %714 = vmatprep.subr.mxu0 0.0
        %715 = vmatpush1.msra.mxu0 0.0
        %716 = vmatprep.subr.mxu0 0.0
        %717 = vmatpush1.msra.mxu0 0.0
        %718 = vmatprep.subr.mxu0 0.0
        %719 = vmatpush1.msra.mxu0 0.0
        %720 = vmatprep.subr.mxu0 0.0
        %721 = vmatpush1.msra.mxu0 0.0
        %722 = vmatprep.subr.mxu0 0.0
        %723 = vmatpush1.msra.mxu0 0.0
        %724 = vmatprep.subr.mxu0 0.0
        %725 = vmatpush1.msra.mxu0 0.0
        %726 = vmatprep.subr.mxu0 0.0
        %727 = vmatpush1.msra.mxu0 0.0
        %728 = vmatprep.subr.mxu0 0.0
        %729 = vmatpush1.msra.mxu0 0.0
        %730 = vmatprep.subr.mxu0 0.0
        %731 = vmatpush1.msra.mxu0 0.0
        %732 = vmatprep.subr.mxu0 0.0
        %733 = vmatpush1.msra.mxu0 0.0
        %734 = vmatprep.subr.mxu0 0.0
        %735 = vmatpush1.msra.mxu0 0.0
        %736 = vmatprep.subr.mxu0 0.0
        %737 = vmatpush1.msra.mxu0 0.0
        %738 = vmatprep.subr.mxu0 0.0
        %739 = vmatpush1.msra.mxu0 0.0
        %740 = vmatprep.subr.mxu0 0.0
        %741 = vmatpush1.msra.mxu0 0.0
        %742 = vmatprep.subr.mxu0 0.0
        %743 = vmatpush1.msra.mxu0 0.0
        %744 = vmatprep.subr.mxu0 0.0
        %745 = vmatpush1.msra.mxu0 0.0
        %746 = vmatprep.subr.mxu0 0.0
        %747 = vmatpush1.msra.mxu0 0.0
        %748 = vmatprep.subr.mxu0 0.0
        %749 = vmatpush1.msra.mxu0 0.0
        %750 = vmatprep.subr.mxu0 0.0
        %751 = vmatpush1.msra.mxu0 0.0
        %752 = vmatprep.subr.mxu0 0.0
        %753 = vmatpush1.msra.mxu0 0.0
        %754 = vmatprep.subr.mxu0 0.0
        %755 = vmatpush1.msra.mxu0 0.0
        %756 = vmatprep.subr.mxu0 0.0
        %757 = vmatpush1.msra.mxu0 0.0
        %758 = vmatprep.subr.mxu0 0.0
        %759 = vmatpush1.msra.mxu0 0.0
        %760 = vmatprep.subr.mxu0 0.0
        %761 = vmatpush1.msra.mxu0 0.0
        %762 = vmatprep.mubr.f32.mxu0 0.0
        %763 = vmatmul.mubr.f32.gmra.mrb[0].mxu0 %v693
        %v764 = vpop.f32.mrb[0].mxu0
        %v765 = vadd.f32 0.0, %v764
        %v766 = vpop.f32.mrb[0].mxu0
        %767 = vmatprep.mubr.f32.mxu0 0.0
        %768 = vmatmul.mubr.f32.gmra.mrb[0].mxu0 %v696
        %v769 = vpop.f32.mrb[0].mxu0
        %v770 = vadd.f32 0.0, %v769
        %v771 = vpop.f32.mrb[0].mxu0
        %772 = vdwg.mxu0
        %s773 = scalar_lea.vmem %s5, 32
        %v774 = vld [vmem:[%s773] sm:$0xff]
        %v775 = vld [vmem:[%s773 + $0x8] sm:$0xff]
        %v776 = vld [vmem:[%s773 + $0x10] sm:$0xff]
        %v777 = vld [vmem:[%s773 + $0x18] sm:$0xff]
        %vm778 = vcmask 261120
        %v780 = vsel %vm778, %v765, 0
        %v783 = vsel %vm778, %v770, 0
        %785 = vmatprep.subr.mxu0 0.0
        %786 = vmatpush1.msra.mxu0 %v774
        %787 = vmatprep.subr.mxu0 0.0
        %788 = vmatpush1.msra.mxu0 %v775
        %789 = vmatprep.subr.mxu0 0.0
        %790 = vmatpush1.msra.mxu0 %v776
        %791 = vmatprep.subr.mxu0 0.0
        %792 = vmatpush1.msra.mxu0 %v777
        %793 = vmatprep.subr.mxu0 0.0
        %794 = vmatpush1.msra.mxu0 0.0
        %795 = vmatprep.subr.mxu0 0.0
        %796 = vmatpush1.msra.mxu0 0.0
        %797 = vmatprep.subr.mxu0 0.0
        %798 = vmatpush1.msra.mxu0 0.0
        %799 = vmatprep.subr.mxu0 0.0
        %800 = vmatpush1.msra.mxu0 0.0
        %801 = vmatprep.subr.mxu0 0.0
        %802 = vmatpush1.msra.mxu0 0.0
        %803 = vmatprep.subr.mxu0 0.0
        %804 = vmatpush1.msra.mxu0 0.0
        %805 = vmatprep.subr.mxu0 0.0
        %806 = vmatpush1.msra.mxu0 0.0
        %807 = vmatprep.subr.mxu0 0.0
        %808 = vmatpush1.msra.mxu0 0.0
        %809 = vmatprep.subr.mxu0 0.0
        %810 = vmatpush1.msra.mxu0 0.0
        %811 = vmatprep.subr.mxu0 0.0
        %812 = vmatpush1.msra.mxu0 0.0
        %813 = vmatprep.subr.mxu0 0.0
        %814 = vmatpush1.msra.mxu0 0.0
        %815 = vmatprep.subr.mxu0 0.0
        %816 = vmatpush1.msra.mxu0 0.0
        %817 = vmatprep.subr.mxu0 0.0
        %818 = vmatpush1.msra.mxu0 0.0
        %819 = vmatprep.subr.mxu0 0.0
        %820 = vmatpush1.msra.mxu0 0.0
        %821 = vmatprep.subr.mxu0 0.0
        %822 = vmatpush1.msra.mxu0 0.0
        %823 = vmatprep.subr.mxu0 0.0
        %824 = vmatpush1.msra.mxu0 0.0
        %825 = vmatprep.subr.mxu0 0.0
        %826 = vmatpush1.msra.mxu0 0.0
        %827 = vmatprep.subr.mxu0 0.0
        %828 = vmatpush1.msra.mxu0 0.0
        %829 = vmatprep.subr.mxu0 0.0
        %830 = vmatpush1.msra.mxu0 0.0
        %831 = vmatprep.subr.mxu0 0.0
        %832 = vmatpush1.msra.mxu0 0.0
        %833 = vmatprep.subr.mxu0 0.0
        %834 = vmatpush1.msra.mxu0 0.0
        %835 = vmatprep.subr.mxu0 0.0
        %836 = vmatpush1.msra.mxu0 0.0
        %837 = vmatprep.subr.mxu0 0.0
        %838 = vmatpush1.msra.mxu0 0.0
        %839 = vmatprep.subr.mxu0 0.0
        %840 = vmatpush1.msra.mxu0 0.0
        %841 = vmatprep.subr.mxu0 0.0
        %842 = vmatpush1.msra.mxu0 0.0
        %843 = vmatprep.subr.mxu0 0.0
        %844 = vmatpush1.msra.mxu0 0.0
        %845 = vmatprep.subr.mxu0 0.0
        %846 = vmatpush1.msra.mxu0 0.0
        %847 = vmatprep.subr.mxu0 0.0
        %848 = vmatpush1.msra.mxu0 0.0
        %849 = vmatprep.mubr.f32.mxu0 0.0
        %850 = vmatmul.mubr.f32.gmra.mrb[0].mxu0 %v780
        %v851 = vpop.f32.mrb[0].mxu0
        %v852 = vadd.f32 0.0, %v851
        %v853 = vpop.f32.mrb[0].mxu0
        %854 = vmatprep.mubr.f32.mxu0 0.0
        %855 = vmatmul.mubr.f32.gmra.mrb[0].mxu0 %v783
        %v856 = vpop.f32.mrb[0].mxu0
        %v857 = vadd.f32 0.0, %v856
        %v858 = vpop.f32.mrb[0].mxu0
        %859 = vdwg.mxu0
        %v861 = vsel %vm778, %v677, 0
        %v864 = vsel %vm778, %v682, 0
        %866 = vmatprep.subr.mxu0 0.0
        %867 = vmatpush1.msra.mxu0 %v685
        %868 = vmatprep.subr.mxu0 0.0
        %869 = vmatpush1.msra.mxu0 %v686
        %870 = vmatprep.subr.mxu0 0.0
        %871 = vmatpush1.msra.mxu0 %v687
        %872 = vmatprep.subr.mxu0 0.0
        %873 = vmatpush1.msra.mxu0 %v688
        %874 = vmatprep.subr.mxu0 0.0
        %875 = vmatpush1.msra.mxu0 0.0
        %876 = vmatprep.subr.mxu0 0.0
        %877 = vmatpush1.msra.mxu0 0.0
        %878 = vmatprep.subr.mxu0 0.0
        %879 = vmatpush1.msra.mxu0 0.0
        %880 = vmatprep.subr.mxu0 0.0
        %881 = vmatpush1.msra.mxu0 0.0
        %882 = vmatprep.subr.mxu0 0.0
        %883 = vmatpush1.msra.mxu0 0.0
        %884 = vmatprep.subr.mxu0 0.0
        %885 = vmatpush1.msra.mxu0 0.0
        %886 = vmatprep.subr.mxu0 0.0
        %887 = vmatpush1.msra.mxu0 0.0
        %888 = vmatprep.subr.mxu0 0.0
        %889 = vmatpush1.msra.mxu0 0.0
        %890 = vmatprep.subr.mxu0 0.0
        %891 = vmatpush1.msra.mxu0 0.0
        %892 = vmatprep.subr.mxu0 0.0
        %893 = vmatpush1.msra.mxu0 0.0
        %894 = vmatprep.subr.mxu0 0.0
        %895 = vmatpush1.msra.mxu0 0.0
        %896 = vmatprep.subr.mxu0 0.0
        %897 = vmatpush1.msra.mxu0 0.0
        %898 = vmatprep.subr.mxu0 0.0
        %899 = vmatpush1.msra.mxu0 0.0
        %900 = vmatprep.subr.mxu0 0.0
        %901 = vmatpush1.msra.mxu0 0.0
        %902 = vmatprep.subr.mxu0 0.0
        %903 = vmatpush1.msra.mxu0 0.0
        %904 = vmatprep.subr.mxu0 0.0
        %905 = vmatpush1.msra.mxu0 0.0
        %906 = vmatprep.subr.mxu0 0.0
        %907 = vmatpush1.msra.mxu0 0.0
        %908 = vmatprep.subr.mxu0 0.0
        %909 = vmatpush1.msra.mxu0 0.0
        %910 = vmatprep.subr.mxu0 0.0
        %911 = vmatpush1.msra.mxu0 0.0
        %912 = vmatprep.subr.mxu0 0.0
        %913 = vmatpush1.msra.mxu0 0.0
        %914 = vmatprep.subr.mxu0 0.0
        %915 = vmatpush1.msra.mxu0 0.0
        %916 = vmatprep.subr.mxu0 0.0
        %917 = vmatpush1.msra.mxu0 0.0
        %918 = vmatprep.subr.mxu0 0.0
        %919 = vmatpush1.msra.mxu0 0.0
        %920 = vmatprep.subr.mxu0 0.0
        %921 = vmatpush1.msra.mxu0 0.0
        %922 = vmatprep.subr.mxu0 0.0
        %923 = vmatpush1.msra.mxu0 0.0
        %924 = vmatprep.subr.mxu0 0.0
        %925 = vmatpush1.msra.mxu0 0.0
        %926 = vmatprep.subr.mxu0 0.0
        %927 = vmatpush1.msra.mxu0 0.0
        %928 = vmatprep.subr.mxu0 0.0
        %929 = vmatpush1.msra.mxu0 0.0
        %930 = vmatprep.mubr.f32.mxu0 0.0
        %931 = vmatmul.mubr.f32.gmra.mrb[0].mxu0 %v861
        %v932 = vpop.f32.mrb[0].mxu0
        %v933 = vadd.f32 %v852, %v932
        %v934 = vpop.f32.mrb[0].mxu0
        %935 = vmatprep.mubr.f32.mxu0 0.0
        %936 = vmatmul.mubr.f32.gmra.mrb[0].mxu0 %v864
        %v937 = vpop.f32.mrb[0].mxu0
        %v938 = vadd.f32 %v857, %v937
        %v939 = vpop.f32.mrb[0].mxu0
        %940 = vdwg.mxu0
        %941 = vmatprep.subr.mxu0 0.0
        %942 = vmatpush1.msra.mxu0 %v765
        %943 = vmatprep.subr.mxu0 0.0
        %944 = vmatpush1.msra.mxu0 %v770
        %945 = vmatprep.subr.mxu0 0.0
        %946 = vmatpush1.msra.mxu0 0.0
        %947 = vmatprep.subr.mxu0 0.0
        %948 = vmatpush1.msra.mxu0 0.0
        %949 = vmatprep.subr.mxu0 0.0
        %950 = vmatpush1.msra.mxu0 0.0
        %951 = vmatprep.subr.mxu0 0.0
        %952 = vmatpush1.msra.mxu0 0.0
        %953 = vmatprep.subr.mxu0 0.0
        %954 = vmatpush1.msra.mxu0 0.0
        %955 = vmatprep.subr.mxu0 0.0
        %956 = vmatpush1.msra.mxu0 0.0
        %957 = vmatprep.subr.mxu0 0.0
        %958 = vmatpush1.msra.mxu0 0.0
        %959 = vmatprep.subr.mxu0 0.0
        %960 = vmatpush1.msra.mxu0 0.0
        %961 = vmatprep.subr.mxu0 0.0
        %962 = vmatpush1.msra.mxu0 0.0
        %963 = vmatprep.subr.mxu0 0.0
        %964 = vmatpush1.msra.mxu0 0.0
        %965 = vmatprep.subr.mxu0 0.0
        %966 = vmatpush1.msra.mxu0 0.0
        %967 = vmatprep.subr.mxu0 0.0
        %968 = vmatpush1.msra.mxu0 0.0
        %969 = vmatprep.subr.mxu0 0.0
        %970 = vmatpush1.msra.mxu0 0.0
        %971 = vmatprep.subr.mxu0 0.0
        %972 = vmatpush1.msra.mxu0 0.0
        %973 = vmatprep.subr.mxu0 0.0
        %974 = vmatpush1.msra.mxu0 0.0
        %975 = vmatprep.subr.mxu0 0.0
        %976 = vmatpush1.msra.mxu0 0.0
        %977 = vmatprep.subr.mxu0 0.0
        %978 = vmatpush1.msra.mxu0 0.0
        %979 = vmatprep.subr.mxu0 0.0
        %980 = vmatpush1.msra.mxu0 0.0
        %981 = vmatprep.subr.mxu0 0.0
        %982 = vmatpush1.msra.mxu0 0.0
        %983 = vmatprep.subr.mxu0 0.0
        %984 = vmatpush1.msra.mxu0 0.0
        %985 = vmatprep.subr.mxu0 0.0
        %986 = vmatpush1.msra.mxu0 0.0
        %987 = vmatprep.subr.mxu0 0.0
        %988 = vmatpush1.msra.mxu0 0.0
        %989 = vmatprep.subr.mxu0 0.0
        %990 = vmatpush1.msra.mxu0 0.0
        %991 = vmatprep.subr.mxu0 0.0
        %992 = vmatpush1.msra.mxu0 0.0
        %993 = vmatprep.subr.mxu0 0.0
        %994 = vmatpush1.msra.mxu0 0.0
        %995 = vmatprep.subr.mxu0 0.0
        %996 = vmatpush1.msra.mxu0 0.0
        %997 = vmatprep.subr.mxu0 0.0
        %998 = vmatpush1.msra.mxu0 0.0
        %999 = vmatprep.subr.mxu0 0.0
        %1000 = vmatpush1.msra.mxu0 0.0
        %1001 = vmatprep.subr.mxu0 0.0
        %1002 = vmatpush1.msra.mxu0 0.0
        %1003 = vmatprep.subr.mxu0 0.0
        %1004 = vmatpush1.msra.mxu0 0.0
        %1005 = vmatprep.mubr.f32.mxu0 0.0
        %1006 = vmatmul.mubr.f32.gmra.mrb[0].mxu0 %v693
        %v1007 = vpop.f32.mrb[0].mxu0
        %v1008 = vadd.f32 0.0, %v1007
        %v1009 = vpop.f32.mrb[0].mxu0
        %1010 = vmatprep.mubr.f32.mxu0 0.0
        %1011 = vmatmul.mubr.f32.gmra.mrb[0].mxu0 %v696
        %v1012 = vpop.f32.mrb[0].mxu0
        %v1013 = vadd.f32 0.0, %v1012
        %v1014 = vpop.f32.mrb[0].mxu0
        %1015 = vdwg.mxu0
        %v1016 = vmul.f32 %v1008, 2.0
        %v1017 = vmul.f32 %v1013, 2.0
        %v1018 = vsub.f32 %v1016, %v677
        %v1019 = vsub.f32 %v1017, %v682
        %s1020 = scalar_lea.vmem %s5, 64
        %v1021 = vld [vmem:[%s1020] sm:$0xff]
        %v1022 = vld [vmem:[%s1020 + $0x8] sm:$0xff]
        %v1023 = vld [vmem:[%s1020 + $0x10] sm:$0xff]
        %v1024 = vld [vmem:[%s1020 + $0x18] sm:$0xff]
        %v1026 = vsel %vm778, %v1018, 0
        %v1029 = vsel %vm778, %v1019, 0
        %1031 = vmatprep.subr.mxu0 0.0
        %1032 = vmatpush1.msra.mxu0 %v1021
        %1033 = vmatprep.subr.mxu0 0.0
        %1034 = vmatpush1.msra.mxu0 %v1022
        %1035 = vmatprep.subr.mxu0 0.0
        %1036 = vmatpush1.msra.mxu0 %v1023
        %1037 = vmatprep.subr.mxu0 0.0
        %1038 = vmatpush1.msra.mxu0 %v1024
        %1039 = vmatprep.subr.mxu0 0.0
        %1040 = vmatpush1.msra.mxu0 0.0
        %1041 = vmatprep.subr.mxu0 0.0
        %1042 = vmatpush1.msra.mxu0 0.0
        %1043 = vmatprep.subr.mxu0 0.0
        %1044 = vmatpush1.msra.mxu0 0.0
        %1045 = vmatprep.subr.mxu0 0.0
        %1046 = vmatpush1.msra.mxu0 0.0
        %1047 = vmatprep.subr.mxu0 0.0
        %1048 = vmatpush1.msra.mxu0 0.0
        %1049 = vmatprep.subr.mxu0 0.0
        %1050 = vmatpush1.msra.mxu0 0.0
        %1051 = vmatprep.subr.mxu0 0.0
        %1052 = vmatpush1.msra.mxu0 0.0
        %1053 = vmatprep.subr.mxu0 0.0
        %1054 = vmatpush1.msra.mxu0 0.0
        %1055 = vmatprep.subr.mxu0 0.0
        %1056 = vmatpush1.msra.mxu0 0.0
        %1057 = vmatprep.subr.mxu0 0.0
        %1058 = vmatpush1.msra.mxu0 0.0
        %1059 = vmatprep.subr.mxu0 0.0
        %1060 = vmatpush1.msra.mxu0 0.0
        %1061 = vmatprep.subr.mxu0 0.0
        %1062 = vmatpush1.msra.mxu0 0.0
        %1063 = vmatprep.subr.mxu0 0.0
        %1064 = vmatpush1.msra.mxu0 0.0
        %1065 = vmatprep.subr.mxu0 0.0
        %1066 = vmatpush1.msra.mxu0 0.0
        %1067 = vmatprep.subr.mxu0 0.0
        %1068 = vmatpush1.msra.mxu0 0.0
        %1069 = vmatprep.subr.mxu0 0.0
        %1070 = vmatpush1.msra.mxu0 0.0
        %1071 = vmatprep.subr.mxu0 0.0
        %1072 = vmatpush1.msra.mxu0 0.0
        %1073 = vmatprep.subr.mxu0 0.0
        %1074 = vmatpush1.msra.mxu0 0.0
        %1075 = vmatprep.subr.mxu0 0.0
        %1076 = vmatpush1.msra.mxu0 0.0
        %1077 = vmatprep.subr.mxu0 0.0
        %1078 = vmatpush1.msra.mxu0 0.0
        %1079 = vmatprep.subr.mxu0 0.0
        %1080 = vmatpush1.msra.mxu0 0.0
        %1081 = vmatprep.subr.mxu0 0.0
        %1082 = vmatpush1.msra.mxu0 0.0
        %1083 = vmatprep.subr.mxu0 0.0
        %1084 = vmatpush1.msra.mxu0 0.0
        %1085 = vmatprep.subr.mxu0 0.0
        %1086 = vmatpush1.msra.mxu0 0.0
        %1087 = vmatprep.subr.mxu0 0.0
        %1088 = vmatpush1.msra.mxu0 0.0
        %1089 = vmatprep.subr.mxu0 0.0
        %1090 = vmatpush1.msra.mxu0 0.0
        %1091 = vmatprep.subr.mxu0 0.0
        %1092 = vmatpush1.msra.mxu0 0.0
        %1093 = vmatprep.subr.mxu0 0.0
        %1094 = vmatpush1.msra.mxu0 0.0
        %1095 = vmatprep.mubr.f32.mxu0 0.0
        %1096 = vmatmul.mubr.f32.gmra.mrb[0].mxu0 %v1026
        %v1097 = vpop.f32.mrb[0].mxu0
        %v1098 = vadd.f32 0.0, %v1097
        %v1099 = vpop.f32.mrb[0].mxu0
        %1100 = vmatprep.mubr.f32.mxu0 0.0
        %1101 = vmatmul.mubr.f32.gmra.mrb[0].mxu0 %v1029
        %v1102 = vpop.f32.mrb[0].mxu0
        %v1103 = vadd.f32 0.0, %v1102
        %v1104 = vpop.f32.mrb[0].mxu0
        %1105 = vdwg.mxu0
        %v1106 = vadd.f32 %v933, %v1098
        %v1107 = vadd.f32 %v938, %v1103
        %v1108 = vld [vmem:[#allocation6] sm:$0x1]
        %v1110 = vlaneseq
        %v1111 = vshrl.u32 %v1110, 7
        %v1112 = vsub.s32 0, %v1111
        %v1113 = vrot.slane %v1108, %v1112
        %v1115 = vadd.f32 %v1106, %v1113
        %v1116 = vadd.f32 %v1107, %v1113
        %v1117 = vmax.f32 %v1115, 0.0
        %v1118 = vmax.f32 %v1116, 0.0
        %v1119 = vld [vmem:[%s7] sm:$0xff]
        %v1120 = vld [vmem:[%s7 + $0x8] sm:$0xff]
        %v1121 = vld [vmem:[%s7 + $0x10] sm:$0xff]
        %v1122 = vld [vmem:[%s7 + $0x18] sm:$0xff]
        %v1124 = vsel %vm691, %v1119, 0
        %v1127 = vsel %vm691, %v1120, 0
        %v1130 = vsel %vm691, %v1121, 0
        %v1133 = vsel %vm691, %v1122, 0
        %1135 = vmatprep.subr.mxu0 0.0
        %1136 = vmatpush1.msra.mxu0 %v1117
        %1137 = vmatprep.subr.mxu0 0.0
        %1138 = vmatpush1.msra.mxu0 %v1118
        %1139 = vmatprep.subr.mxu0 0.0
        %1140 = vmatpush1.msra.mxu0 0.0
        %1141 = vmatprep.subr.mxu0 0.0
        %1142 = vmatpush1.msra.mxu0 0.0
        %1143 = vmatprep.subr.mxu0 0.0
        %1144 = vmatpush1.msra.mxu0 0.0
        %1145 = vmatprep.subr.mxu0 0.0
        %1146 = vmatpush1.msra.mxu0 0.0
        %1147 = vmatprep.subr.mxu0 0.0
        %1148 = vmatpush1.msra.mxu0 0.0
        %1149 = vmatprep.subr.mxu0 0.0
        %1150 = vmatpush1.msra.mxu0 0.0
        %1151 = vmatprep.subr.mxu0 0.0
        %1152 = vmatpush1.msra.mxu0 0.0
        %1153 = vmatprep.subr.mxu0 0.0
        %1154 = vmatpush1.msra.mxu0 0.0
        %1155 = vmatprep.subr.mxu0 0.0
        %1156 = vmatpush1.msra.mxu0 0.0
        %1157 = vmatprep.subr.mxu0 0.0
        %1158 = vmatpush1.msra.mxu0 0.0
        %1159 = vmatprep.subr.mxu0 0.0
        %1160 = vmatpush1.msra.mxu0 0.0
        %1161 = vmatprep.subr.mxu0 0.0
        %1162 = vmatpush1.msra.mxu0 0.0
        %1163 = vmatprep.subr.mxu0 0.0
        %1164 = vmatpush1.msra.mxu0 0.0
        %1165 = vmatprep.subr.mxu0 0.0
        %1166 = vmatpush1.msra.mxu0 0.0
        %1167 = vmatprep.subr.mxu0 0.0
        %1168 = vmatpush1.msra.mxu0 0.0
        %1169 = vmatprep.subr.mxu0 0.0
        %1170 = vmatpush1.msra.mxu0 0.0
        %1171 = vmatprep.subr.mxu0 0.0
        %1172 = vmatpush1.msra.mxu0 0.0
        %1173 = vmatprep.subr.mxu0 0.0
        %1174 = vmatpush1.msra.mxu0 0.0
        %1175 = vmatprep.subr.mxu0 0.0
        %1176 = vmatpush1.msra.mxu0 0.0
        %1177 = vmatprep.subr.mxu0 0.0
        %1178 = vmatpush1.msra.mxu0 0.0
        %1179 = vmatprep.subr.mxu0 0.0
        %1180 = vmatpush1.msra.mxu0 0.0
        %1181 = vmatprep.subr.mxu0 0.0
        %1182 = vmatpush1.msra.mxu0 0.0
        %1183 = vmatprep.subr.mxu0 0.0
        %1184 = vmatpush1.msra.mxu0 0.0
        %1185 = vmatprep.subr.mxu0 0.0
        %1186 = vmatpush1.msra.mxu0 0.0
        %1187 = vmatprep.subr.mxu0 0.0
        %1188 = vmatpush1.msra.mxu0 0.0
        %1189 = vmatprep.subr.mxu0 0.0
        %1190 = vmatpush1.msra.mxu0 0.0
        %1191 = vmatprep.subr.mxu0 0.0
        %1192 = vmatpush1.msra.mxu0 0.0
        %1193 = vmatprep.subr.mxu0 0.0
        %1194 = vmatpush1.msra.mxu0 0.0
        %1195 = vmatprep.subr.mxu0 0.0
        %1196 = vmatpush1.msra.mxu0 0.0
        %1197 = vmatprep.subr.mxu0 0.0
        %1198 = vmatpush1.msra.mxu0 0.0
        %1199 = vmatprep.mubr.f32.mxu0 0.0
        %1200 = vmatmul.mubr.f32.gmra.mrb[0].mxu0 %v1124
        %v1201 = vpop.f32.mrb[0].mxu0
        %v1202 = vadd.f32 0.0, %v1201
        %v1203 = vpop.f32.mrb[0].mxu0
        %1204 = vmatprep.mubr.f32.mxu0 0.0
        %1205 = vmatmul.mubr.f32.gmra.mrb[0].mxu0 %v1127
        %v1206 = vpop.f32.mrb[0].mxu0
        %v1207 = vadd.f32 0.0, %v1206
        %v1208 = vpop.f32.mrb[0].mxu0
        %1209 = vmatprep.mubr.f32.mxu0 0.0
        %1210 = vmatmul.mubr.f32.gmra.mrb[0].mxu0 %v1130
        %v1211 = vpop.f32.mrb[0].mxu0
        %v1212 = vadd.f32 0.0, %v1211
        %v1213 = vpop.f32.mrb[0].mxu0
        %1214 = vmatprep.mubr.f32.mxu0 0.0
        %1215 = vmatmul.mubr.f32.gmra.mrb[0].mxu0 %v1133
        %v1216 = vpop.f32.mrb[0].mxu0
        %v1217 = vadd.f32 0.0, %v1216
        %v1218 = vpop.f32.mrb[0].mxu0
        %1219 = vdwg.mxu0
        %v1220 = vld [vmem:[%s9] sm:$0xff]
        %v1221 = vld [vmem:[%s9 + $0x8] sm:$0xff]
        %v1222 = vld [vmem:[%s8] sm:$0xff]
        %v1223 = vld [vmem:[%s8 + $0x8] sm:$0xff]
        %v1224 = vld [vmem:[%s8 + $0x10] sm:$0xff]
        %v1225 = vld [vmem:[%s8 + $0x18] sm:$0xff]
        %v1227 = vsel %vm778, %v1222, 0
        %v1230 = vsel %vm778, %v1223, 0
        %v1233 = vsel %vm778, %v1224, 0
        %v1236 = vsel %vm778, %v1225, 0
        %1238 = vmatprep.subr.mxu0 0.0
        %1239 = vmatpush1.msra.mxu0 %v1202
        %1240 = vmatprep.subr.mxu0 0.0
        %1241 = vmatpush1.msra.mxu0 %v1207
        %1242 = vmatprep.subr.mxu0 0.0
        %1243 = vmatpush1.msra.mxu0 %v1212
        %1244 = vmatprep.subr.mxu0 0.0
        %1245 = vmatpush1.msra.mxu0 %v1217
        %1246 = vmatprep.subr.mxu0 0.0
        %1247 = vmatpush1.msra.mxu0 0.0
        %1248 = vmatprep.subr.mxu0 0.0
        %1249 = vmatpush1.msra.mxu0 0.0
        %1250 = vmatprep.subr.mxu0 0.0
        %1251 = vmatpush1.msra.mxu0 0.0
        %1252 = vmatprep.subr.mxu0 0.0
        %1253 = vmatpush1.msra.mxu0 0.0
        %1254 = vmatprep.subr.mxu0 0.0
        %1255 = vmatpush1.msra.mxu0 0.0
        %1256 = vmatprep.subr.mxu0 0.0
        %1257 = vmatpush1.msra.mxu0 0.0
        %1258 = vmatprep.subr.mxu0 0.0
        %1259 = vmatpush1.msra.mxu0 0.0
        %1260 = vmatprep.subr.mxu0 0.0
        %1261 = vmatpush1.msra.mxu0 0.0
        %1262 = vmatprep.subr.mxu0 0.0
        %1263 = vmatpush1.msra.mxu0 0.0
        %1264 = vmatprep.subr.mxu0 0.0
        %1265 = vmatpush1.msra.mxu0 0.0
        %1266 = vmatprep.subr.mxu0 0.0
        %1267 = vmatpush1.msra.mxu0 0.0
        %1268 = vmatprep.subr.mxu0 0.0
        %1269 = vmatpush1.msra.mxu0 0.0
        %1270 = vmatprep.subr.mxu0 0.0
        %1271 = vmatpush1.msra.mxu0 0.0
        %1272 = vmatprep.subr.mxu0 0.0
        %1273 = vmatpush1.msra.mxu0 0.0
        %1274 = vmatprep.subr.mxu0 0.0
        %1275 = vmatpush1.msra.mxu0 0.0
        %1276 = vmatprep.subr.mxu0 0.0
        %1277 = vmatpush1.msra.mxu0 0.0
        %1278 = vmatprep.subr.mxu0 0.0
        %1279 = vmatpush1.msra.mxu0 0.0
        %1280 = vmatprep.subr.mxu0 0.0
        %1281 = vmatpush1.msra.mxu0 0.0
        %1282 = vmatprep.subr.mxu0 0.0
        %1283 = vmatpush1.msra.mxu0 0.0
        %1284 = vmatprep.subr.mxu0 0.0
        %1285 = vmatpush1.msra.mxu0 0.0
        %1286 = vmatprep.subr.mxu0 0.0
        %1287 = vmatpush1.msra.mxu0 0.0
        %1288 = vmatprep.subr.mxu0 0.0
        %1289 = vmatpush1.msra.mxu0 0.0
        %1290 = vmatprep.subr.mxu0 0.0
        %1291 = vmatpush1.msra.mxu0 0.0
        %1292 = vmatprep.subr.mxu0 0.0
        %1293 = vmatpush1.msra.mxu0 0.0
        %1294 = vmatprep.subr.mxu0 0.0
        %1295 = vmatpush1.msra.mxu0 0.0
        %1296 = vmatprep.subr.mxu0 0.0
        %1297 = vmatpush1.msra.mxu0 0.0
        %1298 = vmatprep.subr.mxu0 0.0
        %1299 = vmatpush1.msra.mxu0 0.0
        %1300 = vmatprep.subr.mxu0 0.0
        %1301 = vmatpush1.msra.mxu0 0.0
        %1302 = vmatprep.mubr.f32.mxu0 0.0
        %1303 = vmatmul.mubr.f32.gmra.mrb[0].mxu0 %v1227
        %v1304 = vpop.f32.mrb[0].mxu0
        %v1305 = vadd.f32 0.0, %v1304
        %v1306 = vpop.f32.mrb[0].mxu0
        %1307 = vmatprep.mubr.f32.mxu0 0.0
        %1308 = vmatmul.mubr.f32.gmra.mrb[0].mxu0 %v1230
        %v1309 = vpop.f32.mrb[0].mxu0
        %v1310 = vadd.f32 0.0, %v1309
        %v1311 = vpop.f32.mrb[0].mxu0
        %1312 = vmatprep.mubr.f32.mxu0 0.0
        %1313 = vmatmul.mubr.f32.gmra.mrb[0].mxu0 %v1233
        %v1314 = vpop.f32.mrb[0].mxu0
        %v1315 = vadd.f32 0.0, %v1314
        %v1316 = vpop.f32.mrb[0].mxu0
        %1317 = vmatprep.mubr.f32.mxu0 0.0
        %1318 = vmatmul.mubr.f32.gmra.mrb[0].mxu0 %v1236
        %v1319 = vpop.f32.mrb[0].mxu0
        %v1320 = vadd.f32 0.0, %v1319
        %v1321 = vpop.f32.mrb[0].mxu0
        %1322 = vdwg.mxu0
        %s1323 = scalar_lea.vmem %s9, 16
        %v1324 = vld [vmem:[%s1323] sm:$0xff]
        %v1325 = vld [vmem:[%s1323 + $0x8] sm:$0xff]
        %v1327 = vsel %vm691, %v1305, 0
        %v1330 = vsel %vm691, %v1310, 0
        %v1333 = vsel %vm691, %v1315, 0
        %v1336 = vsel %vm691, %v1320, 0
        %1338 = vmatprep.subr.mxu0 0.0
        %1339 = vmatpush1.msra.mxu0 %v1324
        %1340 = vmatprep.subr.mxu0 0.0
        %1341 = vmatpush1.msra.mxu0 %v1325
        %1342 = vmatprep.subr.mxu0 0.0
        %1343 = vmatpush1.msra.mxu0 0.0
        %1344 = vmatprep.subr.mxu0 0.0
        %1345 = vmatpush1.msra.mxu0 0.0
        %1346 = vmatprep.subr.mxu0 0.0
        %1347 = vmatpush1.msra.mxu0 0.0
        %1348 = vmatprep.subr.mxu0 0.0
        %1349 = vmatpush1.msra.mxu0 0.0
        %1350 = vmatprep.subr.mxu0 0.0
        %1351 = vmatpush1.msra.mxu0 0.0
        %1352 = vmatprep.subr.mxu0 0.0
        %1353 = vmatpush1.msra.mxu0 0.0
        %1354 = vmatprep.subr.mxu0 0.0
        %1355 = vmatpush1.msra.mxu0 0.0
        %1356 = vmatprep.subr.mxu0 0.0
        %1357 = vmatpush1.msra.mxu0 0.0
        %1358 = vmatprep.subr.mxu0 0.0
        %1359 = vmatpush1.msra.mxu0 0.0
        %1360 = vmatprep.subr.mxu0 0.0
        %1361 = vmatpush1.msra.mxu0 0.0
        %1362 = vmatprep.subr.mxu0 0.0
        %1363 = vmatpush1.msra.mxu0 0.0
        %1364 = vmatprep.subr.mxu0 0.0
        %1365 = vmatpush1.msra.mxu0 0.0
        %1366 = vmatprep.subr.mxu0 0.0
        %1367 = vmatpush1.msra.mxu0 0.0
        %1368 = vmatprep.subr.mxu0 0.0
        %1369 = vmatpush1.msra.mxu0 0.0
        %1370 = vmatprep.subr.mxu0 0.0
        %1371 = vmatpush1.msra.mxu0 0.0
        %1372 = vmatprep.subr.mxu0 0.0
        %1373 = vmatpush1.msra.mxu0 0.0
        %1374 = vmatprep.subr.mxu0 0.0
        %1375 = vmatpush1.msra.mxu0 0.0
        %1376 = vmatprep.subr.mxu0 0.0
        %1377 = vmatpush1.msra.mxu0 0.0
        %1378 = vmatprep.subr.mxu0 0.0
        %1379 = vmatpush1.msra.mxu0 0.0
        %1380 = vmatprep.subr.mxu0 0.0
        %1381 = vmatpush1.msra.mxu0 0.0
        %1382 = vmatprep.subr.mxu0 0.0
        %1383 = vmatpush1.msra.mxu0 0.0
        %1384 = vmatprep.subr.mxu0 0.0
        %1385 = vmatpush1.msra.mxu0 0.0
        %1386 = vmatprep.subr.mxu0 0.0
        %1387 = vmatpush1.msra.mxu0 0.0
        %1388 = vmatprep.subr.mxu0 0.0
        %1389 = vmatpush1.msra.mxu0 0.0
        %1390 = vmatprep.subr.mxu0 0.0
        %1391 = vmatpush1.msra.mxu0 0.0
        %1392 = vmatprep.subr.mxu0 0.0
        %1393 = vmatpush1.msra.mxu0 0.0
        %1394 = vmatprep.subr.mxu0 0.0
        %1395 = vmatpush1.msra.mxu0 0.0
        %1396 = vmatprep.subr.mxu0 0.0
        %1397 = vmatpush1.msra.mxu0 0.0
        %1398 = vmatprep.subr.mxu0 0.0
        %1399 = vmatpush1.msra.mxu0 0.0
        %1400 = vmatprep.subr.mxu0 0.0
        %1401 = vmatpush1.msra.mxu0 0.0
        %1402 = vmatprep.mubr.f32.mxu0 0.0
        %1403 = vmatmul.mubr.f32.gmra.mrb[0].mxu0 %v1327
        %v1404 = vpop.f32.mrb[0].mxu0
        %v1405 = vadd.f32 0.0, %v1404
        %v1406 = vpop.f32.mrb[0].mxu0
        %1407 = vmatprep.mubr.f32.mxu0 0.0
        %1408 = vmatmul.mubr.f32.gmra.mrb[0].mxu0 %v1330
        %v1409 = vpop.f32.mrb[0].mxu0
        %v1410 = vadd.f32 0.0, %v1409
        %v1411 = vpop.f32.mrb[0].mxu0
        %1412 = vmatprep.mubr.f32.mxu0 0.0
        %1413 = vmatmul.mubr.f32.gmra.mrb[0].mxu0 %v1333
        %v1414 = vpop.f32.mrb[0].mxu0
        %v1415 = vadd.f32 0.0, %v1414
        %v1416 = vpop.f32.mrb[0].mxu0
        %1417 = vmatprep.mubr.f32.mxu0 0.0
        %1418 = vmatmul.mubr.f32.gmra.mrb[0].mxu0 %v1336
        %v1419 = vpop.f32.mrb[0].mxu0
        %v1420 = vadd.f32 0.0, %v1419
        %v1421 = vpop.f32.mrb[0].mxu0
        %1422 = vdwg.mxu0
        %v1424 = vsel %vm691, %v1202, 0
        %v1427 = vsel %vm691, %v1207, 0
        %v1430 = vsel %vm691, %v1212, 0
        %v1433 = vsel %vm691, %v1217, 0
        %1435 = vmatprep.subr.mxu0 0.0
        %1436 = vmatpush1.msra.mxu0 %v1220
        %1437 = vmatprep.subr.mxu0 0.0
        %1438 = vmatpush1.msra.mxu0 %v1221
        %1439 = vmatprep.subr.mxu0 0.0
        %1440 = vmatpush1.msra.mxu0 0.0
        %1441 = vmatprep.subr.mxu0 0.0
        %1442 = vmatpush1.msra.mxu0 0.0
        %1443 = vmatprep.subr.mxu0 0.0
        %1444 = vmatpush1.msra.mxu0 0.0
        %1445 = vmatprep.subr.mxu0 0.0
        %1446 = vmatpush1.msra.mxu0 0.0
        %1447 = vmatprep.subr.mxu0 0.0
        %1448 = vmatpush1.msra.mxu0 0.0
        %1449 = vmatprep.subr.mxu0 0.0
        %1450 = vmatpush1.msra.mxu0 0.0
        %1451 = vmatprep.subr.mxu0 0.0
        %1452 = vmatpush1.msra.mxu0 0.0
        %1453 = vmatprep.subr.mxu0 0.0
        %1454 = vmatpush1.msra.mxu0 0.0
        %1455 = vmatprep.subr.mxu0 0.0
        %1456 = vmatpush1.msra.mxu0 0.0
        %1457 = vmatprep.subr.mxu0 0.0
        %1458 = vmatpush1.msra.mxu0 0.0
        %1459 = vmatprep.subr.mxu0 0.0
        %1460 = vmatpush1.msra.mxu0 0.0
        %1461 = vmatprep.subr.mxu0 0.0
        %1462 = vmatpush1.msra.mxu0 0.0
        %1463 = vmatprep.subr.mxu0 0.0
        %1464 = vmatpush1.msra.mxu0 0.0
        %1465 = vmatprep.subr.mxu0 0.0
        %1466 = vmatpush1.msra.mxu0 0.0
        %1467 = vmatprep.subr.mxu0 0.0
        %1468 = vmatpush1.msra.mxu0 0.0
        %1469 = vmatprep.subr.mxu0 0.0
        %1470 = vmatpush1.msra.mxu0 0.0
        %1471 = vmatprep.subr.mxu0 0.0
        %1472 = vmatpush1.msra.mxu0 0.0
        %1473 = vmatprep.subr.mxu0 0.0
        %1474 = vmatpush1.msra.mxu0 0.0
        %1475 = vmatprep.subr.mxu0 0.0
        %1476 = vmatpush1.msra.mxu0 0.0
        %1477 = vmatprep.subr.mxu0 0.0
        %1478 = vmatpush1.msra.mxu0 0.0
        %1479 = vmatprep.subr.mxu0 0.0
        %1480 = vmatpush1.msra.mxu0 0.0
        %1481 = vmatprep.subr.mxu0 0.0
        %1482 = vmatpush1.msra.mxu0 0.0
        %1483 = vmatprep.subr.mxu0 0.0
        %1484 = vmatpush1.msra.mxu0 0.0
        %1485 = vmatprep.subr.mxu0 0.0
        %1486 = vmatpush1.msra.mxu0 0.0
        %1487 = vmatprep.subr.mxu0 0.0
        %1488 = vmatpush1.msra.mxu0 0.0
        %1489 = vmatprep.subr.mxu0 0.0
        %1490 = vmatpush1.msra.mxu0 0.0
        %1491 = vmatprep.subr.mxu0 0.0
        %1492 = vmatpush1.msra.mxu0 0.0
        %1493 = vmatprep.subr.mxu0 0.0
        %1494 = vmatpush1.msra.mxu0 0.0
        %1495 = vmatprep.subr.mxu0 0.0
        %1496 = vmatpush1.msra.mxu0 0.0
        %1497 = vmatprep.subr.mxu0 0.0
        %1498 = vmatpush1.msra.mxu0 0.0
        %1499 = vmatprep.mubr.f32.mxu0 0.0
        %1500 = vmatmul.mubr.f32.gmra.mrb[0].mxu0 %v1424
        %v1501 = vpop.f32.mrb[0].mxu0
        %v1502 = vadd.f32 %v1405, %v1501
        %v1503 = vpop.f32.mrb[0].mxu0
        %1504 = vmatprep.mubr.f32.mxu0 0.0
        %1505 = vmatmul.mubr.f32.gmra.mrb[0].mxu0 %v1427
        %v1506 = vpop.f32.mrb[0].mxu0
        %v1507 = vadd.f32 %v1410, %v1506
        %v1508 = vpop.f32.mrb[0].mxu0
        %1509 = vmatprep.mubr.f32.mxu0 0.0
        %1510 = vmatmul.mubr.f32.gmra.mrb[0].mxu0 %v1430
        %v1511 = vpop.f32.mrb[0].mxu0
        %v1512 = vadd.f32 %v1415, %v1511
        %v1513 = vpop.f32.mrb[0].mxu0
        %1514 = vmatprep.mubr.f32.mxu0 0.0
        %1515 = vmatmul.mubr.f32.gmra.mrb[0].mxu0 %v1433
        %v1516 = vpop.f32.mrb[0].mxu0
        %v1517 = vadd.f32 %v1420, %v1516
        %v1518 = vpop.f32.mrb[0].mxu0
        %1519 = vdwg.mxu0
        %1520 = vmatprep.subr.mxu0 0.0
        %1521 = vmatpush1.msra.mxu0 %v1305
        %1522 = vmatprep.subr.mxu0 0.0
        %1523 = vmatpush1.msra.mxu0 %v1310
        %1524 = vmatprep.subr.mxu0 0.0
        %1525 = vmatpush1.msra.mxu0 %v1315
        %1526 = vmatprep.subr.mxu0 0.0
        %1527 = vmatpush1.msra.mxu0 %v1320
        %1528 = vmatprep.subr.mxu0 0.0
        %1529 = vmatpush1.msra.mxu0 0.0
        %1530 = vmatprep.subr.mxu0 0.0
        %1531 = vmatpush1.msra.mxu0 0.0
        %1532 = vmatprep.subr.mxu0 0.0
        %1533 = vmatpush1.msra.mxu0 0.0
        %1534 = vmatprep.subr.mxu0 0.0
        %1535 = vmatpush1.msra.mxu0 0.0
        %1536 = vmatprep.subr.mxu0 0.0
        %1537 = vmatpush1.msra.mxu0 0.0
        %1538 = vmatprep.subr.mxu0 0.0
        %1539 = vmatpush1.msra.mxu0 0.0
        %1540 = vmatprep.subr.mxu0 0.0
        %1541 = vmatpush1.msra.mxu0 0.0
        %1542 = vmatprep.subr.mxu0 0.0
        %1543 = vmatpush1.msra.mxu0 0.0
        %1544 = vmatprep.subr.mxu0 0.0
        %1545 = vmatpush1.msra.mxu0 0.0
        %1546 = vmatprep.subr.mxu0 0.0
        %1547 = vmatpush1.msra.mxu0 0.0
        %1548 = vmatprep.subr.mxu0 0.0
        %1549 = vmatpush1.msra.mxu0 0.0
        %1550 = vmatprep.subr.mxu0 0.0
        %1551 = vmatpush1.msra.mxu0 0.0
        %1552 = vmatprep.subr.mxu0 0.0
        %1553 = vmatpush1.msra.mxu0 0.0
        %1554 = vmatprep.subr.mxu0 0.0
        %1555 = vmatpush1.msra.mxu0 0.0
        %1556 = vmatprep.subr.mxu0 0.0
        %1557 = vmatpush1.msra.mxu0 0.0
        %1558 = vmatprep.subr.mxu0 0.0
        %1559 = vmatpush1.msra.mxu0 0.0
        %1560 = vmatprep.subr.mxu0 0.0
        %1561 = vmatpush1.msra.mxu0 0.0
        %1562 = vmatprep.subr.mxu0 0.0
        %1563 = vmatpush1.msra.mxu0 0.0
        %1564 = vmatprep.subr.mxu0 0.0
        %1565 = vmatpush1.msra.mxu0 0.0
        %1566 = vmatprep.subr.mxu0 0.0
        %1567 = vmatpush1.msra.mxu0 0.0
        %1568 = vmatprep.subr.mxu0 0.0
        %1569 = vmatpush1.msra.mxu0 0.0
        %1570 = vmatprep.subr.mxu0 0.0
        %1571 = vmatpush1.msra.mxu0 0.0
        %1572 = vmatprep.subr.mxu0 0.0
        %1573 = vmatpush1.msra.mxu0 0.0
        %1574 = vmatprep.subr.mxu0 0.0
        %1575 = vmatpush1.msra.mxu0 0.0
        %1576 = vmatprep.subr.mxu0 0.0
        %1577 = vmatpush1.msra.mxu0 0.0
        %1578 = vmatprep.subr.mxu0 0.0
        %1579 = vmatpush1.msra.mxu0 0.0
        %1580 = vmatprep.subr.mxu0 0.0
        %1581 = vmatpush1.msra.mxu0 0.0
        %1582 = vmatprep.subr.mxu0 0.0
        %1583 = vmatpush1.msra.mxu0 0.0
        %1584 = vmatprep.mubr.f32.mxu0 0.0
        %1585 = vmatmul.mubr.f32.gmra.mrb[0].mxu0 %v1227
        %v1586 = vpop.f32.mrb[0].mxu0
        %v1587 = vadd.f32 0.0, %v1586
        %v1588 = vpop.f32.mrb[0].mxu0
        %1589 = vmatprep.mubr.f32.mxu0 0.0
        %1590 = vmatmul.mubr.f32.gmra.mrb[0].mxu0 %v1230
        %v1591 = vpop.f32.mrb[0].mxu0
        %v1592 = vadd.f32 0.0, %v1591
        %v1593 = vpop.f32.mrb[0].mxu0
        %1594 = vmatprep.mubr.f32.mxu0 0.0
        %1595 = vmatmul.mubr.f32.gmra.mrb[0].mxu0 %v1233
        %v1596 = vpop.f32.mrb[0].mxu0
        %v1597 = vadd.f32 0.0, %v1596
        %v1598 = vpop.f32.mrb[0].mxu0
        %1599 = vmatprep.mubr.f32.mxu0 0.0
        %1600 = vmatmul.mubr.f32.gmra.mrb[0].mxu0 %v1236
        %v1601 = vpop.f32.mrb[0].mxu0
        %v1602 = vadd.f32 0.0, %v1601
        %v1603 = vpop.f32.mrb[0].mxu0
        %1604 = vdwg.mxu0
        %v1605 = vmul.f32 %v1587, 2.0
        %v1606 = vmul.f32 %v1592, 2.0
        %v1607 = vmul.f32 %v1597, 2.0
        %v1608 = vmul.f32 %v1602, 2.0
        %v1609 = vsub.f32 %v1605, %v1202
        %v1610 = vsub.f32 %v1606, %v1207
        %v1611 = vsub.f32 %v1607, %v1212
        %v1612 = vsub.f32 %v1608, %v1217
        %s1613 = scalar_lea.vmem %s9, 32
        %v1614 = vld [vmem:[%s1613] sm:$0xff]
        %v1615 = vld [vmem:[%s1613 + $0x8] sm:$0xff]
        %v1617 = vsel %vm691, %v1609, 0
        %v1620 = vsel %vm691, %v1610, 0
        %v1623 = vsel %vm691, %v1611, 0
        %v1626 = vsel %vm691, %v1612, 0
        %1628 = vmatprep.subr.mxu0 0.0
        %1629 = vmatpush1.msra.mxu0 %v1614
        %1630 = vmatprep.subr.mxu0 0.0
        %1631 = vmatpush1.msra.mxu0 %v1615
        %1632 = vmatprep.subr.mxu0 0.0
        %1633 = vmatpush1.msra.mxu0 0.0
        %1634 = vmatprep.subr.mxu0 0.0
        %1635 = vmatpush1.msra.mxu0 0.0
        %1636 = vmatprep.subr.mxu0 0.0
        %1637 = vmatpush1.msra.mxu0 0.0
        %1638 = vmatprep.subr.mxu0 0.0
        %1639 = vmatpush1.msra.mxu0 0.0
        %1640 = vmatprep.subr.mxu0 0.0
        %1641 = vmatpush1.msra.mxu0 0.0
        %1642 = vmatprep.subr.mxu0 0.0
        %1643 = vmatpush1.msra.mxu0 0.0
        %1644 = vmatprep.subr.mxu0 0.0
        %1645 = vmatpush1.msra.mxu0 0.0
        %1646 = vmatprep.subr.mxu0 0.0
        %1647 = vmatpush1.msra.mxu0 0.0
        %1648 = vmatprep.subr.mxu0 0.0
        %1649 = vmatpush1.msra.mxu0 0.0
        %1650 = vmatprep.subr.mxu0 0.0
        %1651 = vmatpush1.msra.mxu0 0.0
        %1652 = vmatprep.subr.mxu0 0.0
        %1653 = vmatpush1.msra.mxu0 0.0
        %1654 = vmatprep.subr.mxu0 0.0
        %1655 = vmatpush1.msra.mxu0 0.0
        %1656 = vmatprep.subr.mxu0 0.0
        %1657 = vmatpush1.msra.mxu0 0.0
        %1658 = vmatprep.subr.mxu0 0.0
        %1659 = vmatpush1.msra.mxu0 0.0
        %1660 = vmatprep.subr.mxu0 0.0
        %1661 = vmatpush1.msra.mxu0 0.0
        %1662 = vmatprep.subr.mxu0 0.0
        %1663 = vmatpush1.msra.mxu0 0.0
        %1664 = vmatprep.subr.mxu0 0.0
        %1665 = vmatpush1.msra.mxu0 0.0
        %1666 = vmatprep.subr.mxu0 0.0
        %1667 = vmatpush1.msra.mxu0 0.0
        %1668 = vmatprep.subr.mxu0 0.0
        %1669 = vmatpush1.msra.mxu0 0.0
        %1670 = vmatprep.subr.mxu0 0.0
        %1671 = vmatpush1.msra.mxu0 0.0
        %1672 = vmatprep.subr.mxu0 0.0
        %1673 = vmatpush1.msra.mxu0 0.0
        %1674 = vmatprep.subr.mxu0 0.0
        %1675 = vmatpush1.msra.mxu0 0.0
        %1676 = vmatprep.subr.mxu0 0.0
        %1677 = vmatpush1.msra.mxu0 0.0
        %1678 = vmatprep.subr.mxu0 0.0
        %1679 = vmatpush1.msra.mxu0 0.0
        %1680 = vmatprep.subr.mxu0 0.0
        %1681 = vmatpush1.msra.mxu0 0.0
        %1682 = vmatprep.subr.mxu0 0.0
        %1683 = vmatpush1.msra.mxu0 0.0
        %1684 = vmatprep.subr.mxu0 0.0
        %1685 = vmatpush1.msra.mxu0 0.0
        %1686 = vmatprep.subr.mxu0 0.0
        %1687 = vmatpush1.msra.mxu0 0.0
        %1688 = vmatprep.subr.mxu0 0.0
        %1689 = vmatpush1.msra.mxu0 0.0
        %1690 = vmatprep.subr.mxu0 0.0
        %1691 = vmatpush1.msra.mxu0 0.0
        %1692 = vmatprep.mubr.f32.mxu0 0.0
        %1693 = vmatmul.mubr.f32.gmra.mrb[0].mxu0 %v1617
        %v1694 = vpop.f32.mrb[0].mxu0
        %v1695 = vadd.f32 0.0, %v1694
        %v1696 = vpop.f32.mrb[0].mxu0
        %1697 = vmatprep.mubr.f32.mxu0 0.0
        %1698 = vmatmul.mubr.f32.gmra.mrb[0].mxu0 %v1620
        %v1699 = vpop.f32.mrb[0].mxu0
        %v1700 = vadd.f32 0.0, %v1699
        %v1701 = vpop.f32.mrb[0].mxu0
        %1702 = vmatprep.mubr.f32.mxu0 0.0
        %1703 = vmatmul.mubr.f32.gmra.mrb[0].mxu0 %v1623
        %v1704 = vpop.f32.mrb[0].mxu0
        %v1705 = vadd.f32 0.0, %v1704
        %v1706 = vpop.f32.mrb[0].mxu0
        %1707 = vmatprep.mubr.f32.mxu0 0.0
        %1708 = vmatmul.mubr.f32.gmra.mrb[0].mxu0 %v1626
        %v1709 = vpop.f32.mrb[0].mxu0
        %v1710 = vadd.f32 0.0, %v1709
        %v1711 = vpop.f32.mrb[0].mxu0
        %1712 = vdwg.mxu0
        %v1713 = vadd.f32 %v1502, %v1695
        %v1714 = vadd.f32 %v1507, %v1700
        %v1715 = vadd.f32 %v1512, %v1705
        %v1716 = vadd.f32 %v1517, %v1710
        %v1717 = vld [vmem:[%s10] sm:$0x1]
        %v1719 = vlaneseq
        %v1720 = vshrl.u32 %v1719, 7
        %v1721 = vsub.s32 0, %v1720
        %v1722 = vrot.slane %v1717, %v1721
        %v1724 = vadd.f32 %v1713, %v1722
        %v1725 = vadd.f32 %v1714, %v1722
        %v1726 = vadd.f32 %v1715, %v1722
        %v1727 = vadd.f32 %v1716, %v1722
        %v1728 = vmax.f32 %v1724, 0.0
        %v1729 = vmax.f32 %v1725, 0.0
        %v1730 = vmax.f32 %v1726, 0.0
        %v1731 = vmax.f32 %v1727, 0.0
        %v1732 = vld [vmem:[%s11] sm:$0xff]
        %v1733 = vld [vmem:[%s11 + $0x8] sm:$0xff]
        %v1734 = vld [vmem:[%s11 + $0x10] sm:$0xff]
        %v1735 = vld [vmem:[%s11 + $0x18] sm:$0xff]
        %v1736 = vld [vmem:[%s11 + $0x20] sm:$0xff]
        %v1737 = vld [vmem:[%s11 + $0x28] sm:$0xff]
        %v1738 = vld [vmem:[%s11 + $0x30] sm:$0xff]
        %v1739 = vld [vmem:[%s11 + $0x38] sm:$0xff]
        %v1741 = vsel %vm778, %v1732, 0
        %v1744 = vsel %vm778, %v1733, 0
        %v1747 = vsel %vm778, %v1734, 0
        %v1750 = vsel %vm778, %v1735, 0
        %v1753 = vsel %vm778, %v1736, 0
        %v1756 = vsel %vm778, %v1737, 0
        %v1759 = vsel %vm778, %v1738, 0
        %v1762 = vsel %vm778, %v1739, 0
        %1764 = vmatprep.subr.mxu0 0.0
        %1765 = vmatpush1.msra.mxu0 %v1728
        %1766 = vmatprep.subr.mxu0 0.0
        %1767 = vmatpush1.msra.mxu0 %v1729
        %1768 = vmatprep.subr.mxu0 0.0
        %1769 = vmatpush1.msra.mxu0 %v1730
        %1770 = vmatprep.subr.mxu0 0.0
        %1771 = vmatpush1.msra.mxu0 %v1731
        %1772 = vmatprep.subr.mxu0 0.0
        %1773 = vmatpush1.msra.mxu0 0.0
        %1774 = vmatprep.subr.mxu0 0.0
        %1775 = vmatpush1.msra.mxu0 0.0
        %1776 = vmatprep.subr.mxu0 0.0
        %1777 = vmatpush1.msra.mxu0 0.0
        %1778 = vmatprep.subr.mxu0 0.0
        %1779 = vmatpush1.msra.mxu0 0.0
        %1780 = vmatprep.subr.mxu0 0.0
        %1781 = vmatpush1.msra.mxu0 0.0
        %1782 = vmatprep.subr.mxu0 0.0
        %1783 = vmatpush1.msra.mxu0 0.0
        %1784 = vmatprep.subr.mxu0 0.0
        %1785 = vmatpush1.msra.mxu0 0.0
        %1786 = vmatprep.subr.mxu0 0.0
        %1787 = vmatpush1.msra.mxu0 0.0
        %1788 = vmatprep.subr.mxu0 0.0
        %1789 = vmatpush1.msra.mxu0 0.0
        %1790 = vmatprep.subr.mxu0 0.0
        %1791 = vmatpush1.msra.mxu0 0.0
        %1792 = vmatprep.subr.mxu0 0.0
        %1793 = vmatpush1.msra.mxu0 0.0
        %1794 = vmatprep.subr.mxu0 0.0
        %1795 = vmatpush1.msra.mxu0 0.0
        %1796 = vmatprep.subr.mxu0 0.0
        %1797 = vmatpush1.msra.mxu0 0.0
        %1798 = vmatprep.subr.mxu0 0.0
        %1799 = vmatpush1.msra.mxu0 0.0
        %1800 = vmatprep.subr.mxu0 0.0
        %1801 = vmatpush1.msra.mxu0 0.0
        %1802 = vmatprep.subr.mxu0 0.0
        %1803 = vmatpush1.msra.mxu0 0.0
        %1804 = vmatprep.subr.mxu0 0.0
        %1805 = vmatpush1.msra.mxu0 0.0
        %1806 = vmatprep.subr.mxu0 0.0
        %1807 = vmatpush1.msra.mxu0 0.0
        %1808 = vmatprep.subr.mxu0 0.0
        %1809 = vmatpush1.msra.mxu0 0.0
        %1810 = vmatprep.subr.mxu0 0.0
        %1811 = vmatpush1.msra.mxu0 0.0
        %1812 = vmatprep.subr.mxu0 0.0
        %1813 = vmatpush1.msra.mxu0 0.0
        %1814 = vmatprep.subr.mxu0 0.0
        %1815 = vmatpush1.msra.mxu0 0.0
        %1816 = vmatprep.subr.mxu0 0.0
        %1817 = vmatpush1.msra.mxu0 0.0
        %1818 = vmatprep.subr.mxu0 0.0
        %1819 = vmatpush1.msra.mxu0 0.0
        %1820 = vmatprep.subr.mxu0 0.0
        %1821 = vmatpush1.msra.mxu0 0.0
        %1822 = vmatprep.subr.mxu0 0.0
        %1823 = vmatpush1.msra.mxu0 0.0
        %1824 = vmatprep.subr.mxu0 0.0
        %1825 = vmatpush1.msra.mxu0 0.0
        %1826 = vmatprep.subr.mxu0 0.0
        %1827 = vmatpush1.msra.mxu0 0.0
        %1828 = vmatprep.mubr.f32.mxu0 0.0
        %1829 = vmatmul.mubr.f32.gmra.mrb[0].mxu0 %v1741
        %v1830 = vpop.f32.mrb[0].mxu0
        %v1831 = vadd.f32 0.0, %v1830
        %v1832 = vpop.f32.mrb[0].mxu0
        %1833 = vmatprep.mubr.f32.mxu0 0.0
        %1834 = vmatmul.mubr.f32.gmra.mrb[0].mxu0 %v1744
        %v1835 = vpop.f32.mrb[0].mxu0
        %v1836 = vadd.f32 0.0, %v1835
        %v1837 = vpop.f32.mrb[0].mxu0
        %1838 = vmatprep.mubr.f32.mxu0 0.0
        %1839 = vmatmul.mubr.f32.gmra.mrb[0].mxu0 %v1747
        %v1840 = vpop.f32.mrb[0].mxu0
        %v1841 = vadd.f32 0.0, %v1840
        %v1842 = vpop.f32.mrb[0].mxu0
        %1843 = vmatprep.mubr.f32.mxu0 0.0
        %1844 = vmatmul.mubr.f32.gmra.mrb[0].mxu0 %v1750
        %v1845 = vpop.f32.mrb[0].mxu0
        %v1846 = vadd.f32 0.0, %v1845
        %v1847 = vpop.f32.mrb[0].mxu0
        %1848 = vmatprep.mubr.f32.mxu0 0.0
        %1849 = vmatmul.mubr.f32.gmra.mrb[0].mxu0 %v1753
        %v1850 = vpop.f32.mrb[0].mxu0
        %v1851 = vadd.f32 0.0, %v1850
        %v1852 = vpop.f32.mrb[0].mxu0
        %1853 = vmatprep.mubr.f32.mxu0 0.0
        %1854 = vmatmul.mubr.f32.gmra.mrb[0].mxu0 %v1756
        %v1855 = vpop.f32.mrb[0].mxu0
        %v1856 = vadd.f32 0.0, %v1855
        %v1857 = vpop.f32.mrb[0].mxu0
        %1858 = vmatprep.mubr.f32.mxu0 0.0
        %1859 = vmatmul.mubr.f32.gmra.mrb[0].mxu0 %v1759
        %v1860 = vpop.f32.mrb[0].mxu0
        %v1861 = vadd.f32 0.0, %v1860
        %v1862 = vpop.f32.mrb[0].mxu0
        %1863 = vmatprep.mubr.f32.mxu0 0.0
        %1864 = vmatmul.mubr.f32.gmra.mrb[0].mxu0 %v1762
        %v1865 = vpop.f32.mrb[0].mxu0
        %v1866 = vadd.f32 0.0, %v1865
        %v1867 = vpop.f32.mrb[0].mxu0
        %1868 = vdwg.mxu0
        %v1869 = vld [vmem:[%s13] sm:$0xff]
        %v1870 = vld [vmem:[%s13 + $0x8] sm:$0xff]
        %v1871 = vld [vmem:[%s12] sm:$0xff]
        %v1872 = vld [vmem:[%s12 + $0x8] sm:$0xff]
        %v1873 = vld [vmem:[%s12 + $0x10] sm:$0xff]
        %v1874 = vld [vmem:[%s12 + $0x18] sm:$0xff]
        %v1875 = vld [vmem:[%s12 + $0x20] sm:$0xff]
        %v1876 = vld [vmem:[%s12 + $0x28] sm:$0xff]
        %v1877 = vld [vmem:[%s12 + $0x30] sm:$0xff]
        %v1878 = vld [vmem:[%s12 + $0x38] sm:$0xff]
        %vm1879 = vcmask 523264
        %v1881 = vsel %vm1879, %v1871, 0
        %v1884 = vsel %vm1879, %v1872, 0
        %v1887 = vsel %vm1879, %v1873, 0
        %v1890 = vsel %vm1879, %v1874, 0
        %v1893 = vsel %vm1879, %v1875, 0
        %v1896 = vsel %vm1879, %v1876, 0
        %v1899 = vsel %vm1879, %v1877, 0
        %v1902 = vsel %vm1879, %v1878, 0
        %1904 = vmatprep.subr.mxu0 0.0
        %1905 = vmatpush1.msra.mxu0 %v1831
        %1906 = vmatprep.subr.mxu0 0.0
        %1907 = vmatpush1.msra.mxu0 %v1836
        %1908 = vmatprep.subr.mxu0 0.0
        %1909 = vmatpush1.msra.mxu0 %v1841
        %1910 = vmatprep.subr.mxu0 0.0
        %1911 = vmatpush1.msra.mxu0 %v1846
        %1912 = vmatprep.subr.mxu0 0.0
        %1913 = vmatpush1.msra.mxu0 %v1851
        %1914 = vmatprep.subr.mxu0 0.0
        %1915 = vmatpush1.msra.mxu0 %v1856
        %1916 = vmatprep.subr.mxu0 0.0
        %1917 = vmatpush1.msra.mxu0 %v1861
        %1918 = vmatprep.subr.mxu0 0.0
        %1919 = vmatpush1.msra.mxu0 %v1866
        %1920 = vmatprep.subr.mxu0 0.0
        %1921 = vmatpush1.msra.mxu0 0.0
        %1922 = vmatprep.subr.mxu0 0.0
        %1923 = vmatpush1.msra.mxu0 0.0
        %1924 = vmatprep.subr.mxu0 0.0
        %1925 = vmatpush1.msra.mxu0 0.0
        %1926 = vmatprep.subr.mxu0 0.0
        %1927 = vmatpush1.msra.mxu0 0.0
        %1928 = vmatprep.subr.mxu0 0.0
        %1929 = vmatpush1.msra.mxu0 0.0
        %1930 = vmatprep.subr.mxu0 0.0
        %1931 = vmatpush1.msra.mxu0 0.0
        %1932 = vmatprep.subr.mxu0 0.0
        %1933 = vmatpush1.msra.mxu0 0.0
        %1934 = vmatprep.subr.mxu0 0.0
        %1935 = vmatpush1.msra.mxu0 0.0
        %1936 = vmatprep.subr.mxu0 0.0
        %1937 = vmatpush1.msra.mxu0 0.0
        %1938 = vmatprep.subr.mxu0 0.0
        %1939 = vmatpush1.msra.mxu0 0.0
        %1940 = vmatprep.subr.mxu0 0.0
        %1941 = vmatpush1.msra.mxu0 0.0
        %1942 = vmatprep.subr.mxu0 0.0
        %1943 = vmatpush1.msra.mxu0 0.0
        %1944 = vmatprep.subr.mxu0 0.0
        %1945 = vmatpush1.msra.mxu0 0.0
        %1946 = vmatprep.subr.mxu0 0.0
        %1947 = vmatpush1.msra.mxu0 0.0
        %1948 = vmatprep.subr.mxu0 0.0
        %1949 = vmatpush1.msra.mxu0 0.0
        %1950 = vmatprep.subr.mxu0 0.0
        %1951 = vmatpush1.msra.mxu0 0.0
        %1952 = vmatprep.subr.mxu0 0.0
        %1953 = vmatpush1.msra.mxu0 0.0
        %1954 = vmatprep.subr.mxu0 0.0
        %1955 = vmatpush1.msra.mxu0 0.0
        %1956 = vmatprep.subr.mxu0 0.0
        %1957 = vmatpush1.msra.mxu0 0.0
        %1958 = vmatprep.subr.mxu0 0.0
        %1959 = vmatpush1.msra.mxu0 0.0
        %1960 = vmatprep.subr.mxu0 0.0
        %1961 = vmatpush1.msra.mxu0 0.0
        %1962 = vmatprep.subr.mxu0 0.0
        %1963 = vmatpush1.msra.mxu0 0.0
        %1964 = vmatprep.subr.mxu0 0.0
        %1965 = vmatpush1.msra.mxu0 0.0
        %1966 = vmatprep.subr.mxu0 0.0
        %1967 = vmatpush1.msra.mxu0 0.0
        %1968 = vmatprep.mubr.f32.mxu0 0.0
        %1969 = vmatmul.mubr.f32.gmra.mrb[0].mxu0 %v1881
        %v1970 = vpop.f32.mrb[0].mxu0
        %v1971 = vadd.f32 0.0, %v1970
        %v1972 = vpop.f32.mrb[0].mxu0
        %1973 = vmatprep.mubr.f32.mxu0 0.0
        %1974 = vmatmul.mubr.f32.gmra.mrb[0].mxu0 %v1884
        %v1975 = vpop.f32.mrb[0].mxu0
        %v1976 = vadd.f32 0.0, %v1975
        %v1977 = vpop.f32.mrb[0].mxu0
        %1978 = vmatprep.mubr.f32.mxu0 0.0
        %1979 = vmatmul.mubr.f32.gmra.mrb[0].mxu0 %v1887
        %v1980 = vpop.f32.mrb[0].mxu0
        %v1981 = vadd.f32 0.0, %v1980
        %v1982 = vpop.f32.mrb[0].mxu0
        %1983 = vmatprep.mubr.f32.mxu0 0.0
        %1984 = vmatmul.mubr.f32.gmra.mrb[0].mxu0 %v1890
        %v1985 = vpop.f32.mrb[0].mxu0
        %v1986 = vadd.f32 0.0, %v1985
        %v1987 = vpop.f32.mrb[0].mxu0
        %1988 = vmatprep.mubr.f32.mxu0 0.0
        %1989 = vmatmul.mubr.f32.gmra.mrb[0].mxu0 %v1893
        %v1990 = vpop.f32.mrb[0].mxu0
        %v1991 = vadd.f32 0.0, %v1990
        %v1992 = vpop.f32.mrb[0].mxu0
        %1993 = vmatprep.mubr.f32.mxu0 0.0
        %1994 = vmatmul.mubr.f32.gmra.mrb[0].mxu0 %v1896
        %v1995 = vpop.f32.mrb[0].mxu0
        %v1996 = vadd.f32 0.0, %v1995
        %v1997 = vpop.f32.mrb[0].mxu0
        %1998 = vmatprep.mubr.f32.mxu0 0.0
        %1999 = vmatmul.mubr.f32.gmra.mrb[0].mxu0 %v1899
        %v2000 = vpop.f32.mrb[0].mxu0
        %v2001 = vadd.f32 0.0, %v2000
        %v2002 = vpop.f32.mrb[0].mxu0
        %2003 = vmatprep.mubr.f32.mxu0 0.0
        %2004 = vmatmul.mubr.f32.gmra.mrb[0].mxu0 %v1902
        %v2005 = vpop.f32.mrb[0].mxu0
        %v2006 = vadd.f32 0.0, %v2005
        %v2007 = vpop.f32.mrb[0].mxu0
        %2008 = vdwg.mxu0
        %s2009 = scalar_lea.vmem %s13, 16
        %v2010 = vld [vmem:[%s2009] sm:$0xff]
        %v2011 = vld [vmem:[%s2009 + $0x8] sm:$0xff]
        %v2013 = vsel %vm691, %v1971, 0
        %v2016 = vsel %vm691, %v1976, 0
        %v2019 = vsel %vm691, %v1981, 0
        %v2022 = vsel %vm691, %v1986, 0
        %v2025 = vsel %vm691, %v1991, 0
        %v2028 = vsel %vm691, %v1996, 0
        %v2031 = vsel %vm691, %v2001, 0
        %v2034 = vsel %vm691, %v2006, 0
        %2036 = vmatprep.subr.mxu0 0.0
        %2037 = vmatpush1.msra.mxu0 %v2010
        %2038 = vmatprep.subr.mxu0 0.0
        %2039 = vmatpush1.msra.mxu0 %v2011
        %2040 = vmatprep.subr.mxu0 0.0
        %2041 = vmatpush1.msra.mxu0 0.0
        %2042 = vmatprep.subr.mxu0 0.0
        %2043 = vmatpush1.msra.mxu0 0.0
        %2044 = vmatprep.subr.mxu0 0.0
        %2045 = vmatpush1.msra.mxu0 0.0
        %2046 = vmatprep.subr.mxu0 0.0
        %2047 = vmatpush1.msra.mxu0 0.0
        %2048 = vmatprep.subr.mxu0 0.0
        %2049 = vmatpush1.msra.mxu0 0.0
        %2050 = vmatprep.subr.mxu0 0.0
        %2051 = vmatpush1.msra.mxu0 0.0
        %2052 = vmatprep.subr.mxu0 0.0
        %2053 = vmatpush1.msra.mxu0 0.0
        %2054 = vmatprep.subr.mxu0 0.0
        %2055 = vmatpush1.msra.mxu0 0.0
        %2056 = vmatprep.subr.mxu0 0.0
        %2057 = vmatpush1.msra.mxu0 0.0
        %2058 = vmatprep.subr.mxu0 0.0
        %2059 = vmatpush1.msra.mxu0 0.0
        %2060 = vmatprep.subr.mxu0 0.0
        %2061 = vmatpush1.msra.mxu0 0.0
        %2062 = vmatprep.subr.mxu0 0.0
        %2063 = vmatpush1.msra.mxu0 0.0
        %2064 = vmatprep.subr.mxu0 0.0
        %2065 = vmatpush1.msra.mxu0 0.0
        %2066 = vmatprep.subr.mxu0 0.0
        %2067 = vmatpush1.msra.mxu0 0.0
        %2068 = vmatprep.subr.mxu0 0.0
        %2069 = vmatpush1.msra.mxu0 0.0
        %2070 = vmatprep.subr.mxu0 0.0
        %2071 = vmatpush1.msra.mxu0 0.0
        %2072 = vmatprep.subr.mxu0 0.0
        %2073 = vmatpush1.msra.mxu0 0.0
        %2074 = vmatprep.subr.mxu0 0.0
        %2075 = vmatpush1.msra.mxu0 0.0
        %2076 = vmatprep.subr.mxu0 0.0
        %2077 = vmatpush1.msra.mxu0 0.0
        %2078 = vmatprep.subr.mxu0 0.0
        %2079 = vmatpush1.msra.mxu0 0.0
        %2080 = vmatprep.subr.mxu0 0.0
        %2081 = vmatpush1.msra.mxu0 0.0
        %2082 = vmatprep.subr.mxu0 0.0
        %2083 = vmatpush1.msra.mxu0 0.0
        %2084 = vmatprep.subr.mxu0 0.0
        %2085 = vmatpush1.msra.mxu0 0.0
        %2086 = vmatprep.subr.mxu0 0.0
        %2087 = vmatpush1.msra.mxu0 0.0
        %2088 = vmatprep.subr.mxu0 0.0
        %2089 = vmatpush1.msra.mxu0 0.0
        %2090 = vmatprep.subr.mxu0 0.0
        %2091 = vmatpush1.msra.mxu0 0.0
        %2092 = vmatprep.subr.mxu0 0.0
        %2093 = vmatpush1.msra.mxu0 0.0
        %2094 = vmatprep.subr.mxu0 0.0
        %2095 = vmatpush1.msra.mxu0 0.0
        %2096 = vmatprep.subr.mxu0 0.0
        %2097 = vmatpush1.msra.mxu0 0.0
        %2098 = vmatprep.subr.mxu0 0.0
        %2099 = vmatpush1.msra.mxu0 0.0
        %2100 = vmatprep.mubr.f32.mxu0 0.0
        %2101 = vmatmul.mubr.f32.gmra.mrb[0].mxu0 %v2013
        %v2102 = vpop.f32.mrb[0].mxu0
        %v2103 = vadd.f32 0.0, %v2102
        %v2104 = vpop.f32.mrb[0].mxu0
        %2105 = vmatprep.mubr.f32.mxu0 0.0
        %2106 = vmatmul.mubr.f32.gmra.mrb[0].mxu0 %v2016
        %v2107 = vpop.f32.mrb[0].mxu0
        %v2108 = vadd.f32 0.0, %v2107
        %v2109 = vpop.f32.mrb[0].mxu0
        %2110 = vmatprep.mubr.f32.mxu0 0.0
        %2111 = vmatmul.mubr.f32.gmra.mrb[0].mxu0 %v2019
        %v2112 = vpop.f32.mrb[0].mxu0
        %v2113 = vadd.f32 0.0, %v2112
        %v2114 = vpop.f32.mrb[0].mxu0
        %2115 = vmatprep.mubr.f32.mxu0 0.0
        %2116 = vmatmul.mubr.f32.gmra.mrb[0].mxu0 %v2022
        %v2117 = vpop.f32.mrb[0].mxu0
        %v2118 = vadd.f32 0.0, %v2117
        %v2119 = vpop.f32.mrb[0].mxu0
        %2120 = vmatprep.mubr.f32.mxu0 0.0
        %2121 = vmatmul.mubr.f32.gmra.mrb[0].mxu0 %v2025
        %v2122 = vpop.f32.mrb[0].mxu0
        %v2123 = vadd.f32 0.0, %v2122
        %v2124 = vpop.f32.mrb[0].mxu0
        %2125 = vmatprep.mubr.f32.mxu0 0.0
        %2126 = vmatmul.mubr.f32.gmra.mrb[0].mxu0 %v2028
        %v2127 = vpop.f32.mrb[0].mxu0
        %v2128 = vadd.f32 0.0, %v2127
        %v2129 = vpop.f32.mrb[0].mxu0
        %2130 = vmatprep.mubr.f32.mxu0 0.0
        %2131 = vmatmul.mubr.f32.gmra.mrb[0].mxu0 %v2031
        %v2132 = vpop.f32.mrb[0].mxu0
        %v2133 = vadd.f32 0.0, %v2132
        %v2134 = vpop.f32.mrb[0].mxu0
        %2135 = vmatprep.mubr.f32.mxu0 0.0
        %2136 = vmatmul.mubr.f32.gmra.mrb[0].mxu0 %v2034
        %v2137 = vpop.f32.mrb[0].mxu0
        %v2138 = vadd.f32 0.0, %v2137
        %v2139 = vpop.f32.mrb[0].mxu0
        %2140 = vdwg.mxu0
        %v2142 = vsel %vm691, %v1831, 0
        %v2145 = vsel %vm691, %v1836, 0
        %v2148 = vsel %vm691, %v1841, 0
        %v2151 = vsel %vm691, %v1846, 0
        %v2154 = vsel %vm691, %v1851, 0
        %v2157 = vsel %vm691, %v1856, 0
        %v2160 = vsel %vm691, %v1861, 0
        %v2163 = vsel %vm691, %v1866, 0
        %2165 = vmatprep.subr.mxu0 0.0
        %2166 = vmatpush1.msra.mxu0 %v1869
        %2167 = vmatprep.subr.mxu0 0.0
        %2168 = vmatpush1.msra.mxu0 %v1870
        %2169 = vmatprep.subr.mxu0 0.0
        %2170 = vmatpush1.msra.mxu0 0.0
        %2171 = vmatprep.subr.mxu0 0.0
        %2172 = vmatpush1.msra.mxu0 0.0
        %2173 = vmatprep.subr.mxu0 0.0
        %2174 = vmatpush1.msra.mxu0 0.0
        %2175 = vmatprep.subr.mxu0 0.0
        %2176 = vmatpush1.msra.mxu0 0.0
        %2177 = vmatprep.subr.mxu0 0.0
        %2178 = vmatpush1.msra.mxu0 0.0
        %2179 = vmatprep.subr.mxu0 0.0
        %2180 = vmatpush1.msra.mxu0 0.0
        %2181 = vmatprep.subr.mxu0 0.0
        %2182 = vmatpush1.msra.mxu0 0.0
        %2183 = vmatprep.subr.mxu0 0.0
        %2184 = vmatpush1.msra.mxu0 0.0
        %2185 = vmatprep.subr.mxu0 0.0
        %2186 = vmatpush1.msra.mxu0 0.0
        %2187 = vmatprep.subr.mxu0 0.0
        %2188 = vmatpush1.msra.mxu0 0.0
        %2189 = vmatprep.subr.mxu0 0.0
        %2190 = vmatpush1.msra.mxu0 0.0
        %2191 = vmatprep.subr.mxu0 0.0
        %2192 = vmatpush1.msra.mxu0 0.0
        %2193 = vmatprep.subr.mxu0 0.0
        %2194 = vmatpush1.msra.mxu0 0.0
        %2195 = vmatprep.subr.mxu0 0.0
        %2196 = vmatpush1.msra.mxu0 0.0
        %2197 = vmatprep.subr.mxu0 0.0
        %2198 = vmatpush1.msra.mxu0 0.0
        %2199 = vmatprep.subr.mxu0 0.0
        %2200 = vmatpush1.msra.mxu0 0.0
        %2201 = vmatprep.subr.mxu0 0.0
        %2202 = vmatpush1.msra.mxu0 0.0
        %2203 = vmatprep.subr.mxu0 0.0
        %2204 = vmatpush1.msra.mxu0 0.0
        %2205 = vmatprep.subr.mxu0 0.0
        %2206 = vmatpush1.msra.mxu0 0.0
        %2207 = vmatprep.subr.mxu0 0.0
        %2208 = vmatpush1.msra.mxu0 0.0
        %2209 = vmatprep.subr.mxu0 0.0
        %2210 = vmatpush1.msra.mxu0 0.0
        %2211 = vmatprep.subr.mxu0 0.0
        %2212 = vmatpush1.msra.mxu0 0.0
        %2213 = vmatprep.subr.mxu0 0.0
        %2214 = vmatpush1.msra.mxu0 0.0
        %2215 = vmatprep.subr.mxu0 0.0
        %2216 = vmatpush1.msra.mxu0 0.0
        %2217 = vmatprep.subr.mxu0 0.0
        %2218 = vmatpush1.msra.mxu0 0.0
        %2219 = vmatprep.subr.mxu0 0.0
        %2220 = vmatpush1.msra.mxu0 0.0
        %2221 = vmatprep.subr.mxu0 0.0
        %2222 = vmatpush1.msra.mxu0 0.0
        %2223 = vmatprep.subr.mxu0 0.0
        %2224 = vmatpush1.msra.mxu0 0.0
        %2225 = vmatprep.subr.mxu0 0.0
        %2226 = vmatpush1.msra.mxu0 0.0
        %2227 = vmatprep.subr.mxu0 0.0
        %2228 = vmatpush1.msra.mxu0 0.0
        %2229 = vmatprep.mubr.f32.mxu0 0.0
        %2230 = vmatmul.mubr.f32.gmra.mrb[0].mxu0 %v2142
        %v2231 = vpop.f32.mrb[0].mxu0
        %v2232 = vadd.f32 %v2103, %v2231
        %v2233 = vpop.f32.mrb[0].mxu0
        %2234 = vmatprep.mubr.f32.mxu0 0.0
        %2235 = vmatmul.mubr.f32.gmra.mrb[0].mxu0 %v2145
        %v2236 = vpop.f32.mrb[0].mxu0
        %v2237 = vadd.f32 %v2108, %v2236
        %v2238 = vpop.f32.mrb[0].mxu0
        %2239 = vmatprep.mubr.f32.mxu0 0.0
        %2240 = vmatmul.mubr.f32.gmra.mrb[0].mxu0 %v2148
        %v2241 = vpop.f32.mrb[0].mxu0
        %v2242 = vadd.f32 %v2113, %v2241
        %v2243 = vpop.f32.mrb[0].mxu0
        %2244 = vmatprep.mubr.f32.mxu0 0.0
        %2245 = vmatmul.mubr.f32.gmra.mrb[0].mxu0 %v2151
        %v2246 = vpop.f32.mrb[0].mxu0
        %v2247 = vadd.f32 %v2118, %v2246
        %v2248 = vpop.f32.mrb[0].mxu0
        %2249 = vmatprep.mubr.f32.mxu0 0.0
        %2250 = vmatmul.mubr.f32.gmra.mrb[0].mxu0 %v2154
        %v2251 = vpop.f32.mrb[0].mxu0
        %v2252 = vadd.f32 %v2123, %v2251
        %v2253 = vpop.f32.mrb[0].mxu0
        %2254 = vmatprep.mubr.f32.mxu0 0.0
        %2255 = vmatmul.mubr.f32.gmra.mrb[0].mxu0 %v2157
        %v2256 = vpop.f32.mrb[0].mxu0
        %v2257 = vadd.f32 %v2128, %v2256
        %v2258 = vpop.f32.mrb[0].mxu0
        %2259 = vmatprep.mubr.f32.mxu0 0.0
        %2260 = vmatmul.mubr.f32.gmra.mrb[0].mxu0 %v2160
        %v2261 = vpop.f32.mrb[0].mxu0
        %v2262 = vadd.f32 %v2133, %v2261
        %v2263 = vpop.f32.mrb[0].mxu0
        %2264 = vmatprep.mubr.f32.mxu0 0.0
        %2265 = vmatmul.mubr.f32.gmra.mrb[0].mxu0 %v2163
        %v2266 = vpop.f32.mrb[0].mxu0
        %v2267 = vadd.f32 %v2138, %v2266
        %v2268 = vpop.f32.mrb[0].mxu0
        %2269 = vdwg.mxu0
        %2270 = vmatprep.subr.mxu0 0.0
        %2271 = vmatpush1.msra.mxu0 %v1971
        %2272 = vmatprep.subr.mxu0 0.0
        %2273 = vmatpush1.msra.mxu0 %v1976
        %2274 = vmatprep.subr.mxu0 0.0
        %2275 = vmatpush1.msra.mxu0 %v1981
        %2276 = vmatprep.subr.mxu0 0.0
        %2277 = vmatpush1.msra.mxu0 %v1986
        %2278 = vmatprep.subr.mxu0 0.0
        %2279 = vmatpush1.msra.mxu0 %v1991
        %2280 = vmatprep.subr.mxu0 0.0
        %2281 = vmatpush1.msra.mxu0 %v1996
        %2282 = vmatprep.subr.mxu0 0.0
        %2283 = vmatpush1.msra.mxu0 %v2001
        %2284 = vmatprep.subr.mxu0 0.0
        %2285 = vmatpush1.msra.mxu0 %v2006
        %2286 = vmatprep.subr.mxu0 0.0
        %2287 = vmatpush1.msra.mxu0 0.0
        %2288 = vmatprep.subr.mxu0 0.0
        %2289 = vmatpush1.msra.mxu0 0.0
        %2290 = vmatprep.subr.mxu0 0.0
        %2291 = vmatpush1.msra.mxu0 0.0
        %2292 = vmatprep.subr.mxu0 0.0
        %2293 = vmatpush1.msra.mxu0 0.0
        %2294 = vmatprep.subr.mxu0 0.0
        %2295 = vmatpush1.msra.mxu0 0.0
        %2296 = vmatprep.subr.mxu0 0.0
        %2297 = vmatpush1.msra.mxu0 0.0
        %2298 = vmatprep.subr.mxu0 0.0
        %2299 = vmatpush1.msra.mxu0 0.0
        %2300 = vmatprep.subr.mxu0 0.0
        %2301 = vmatpush1.msra.mxu0 0.0
        %2302 = vmatprep.subr.mxu0 0.0
        %2303 = vmatpush1.msra.mxu0 0.0
        %2304 = vmatprep.subr.mxu0 0.0
        %2305 = vmatpush1.msra.mxu0 0.0
        %2306 = vmatprep.subr.mxu0 0.0
        %2307 = vmatpush1.msra.mxu0 0.0
        %2308 = vmatprep.subr.mxu0 0.0
        %2309 = vmatpush1.msra.mxu0 0.0
        %2310 = vmatprep.subr.mxu0 0.0
        %2311 = vmatpush1.msra.mxu0 0.0
        %2312 = vmatprep.subr.mxu0 0.0
        %2313 = vmatpush1.msra.mxu0 0.0
        %2314 = vmatprep.subr.mxu0 0.0
        %2315 = vmatpush1.msra.mxu0 0.0
        %2316 = vmatprep.subr.mxu0 0.0
        %2317 = vmatpush1.msra.mxu0 0.0
        %2318 = vmatprep.subr.mxu0 0.0
        %2319 = vmatpush1.msra.mxu0 0.0
        %2320 = vmatprep.subr.mxu0 0.0
        %2321 = vmatpush1.msra.mxu0 0.0
        %2322 = vmatprep.subr.mxu0 0.0
        %2323 = vmatpush1.msra.mxu0 0.0
        %2324 = vmatprep.subr.mxu0 0.0
        %2325 = vmatpush1.msra.mxu0 0.0
        %2326 = vmatprep.subr.mxu0 0.0
        %2327 = vmatpush1.msra.mxu0 0.0
        %2328 = vmatprep.subr.mxu0 0.0
        %2329 = vmatpush1.msra.mxu0 0.0
        %2330 = vmatprep.subr.mxu0 0.0
        %2331 = vmatpush1.msra.mxu0 0.0
        %2332 = vmatprep.subr.mxu0 0.0
        %2333 = vmatpush1.msra.mxu0 0.0
        %2334 = vmatprep.mubr.f32.mxu0 0.0
        %2335 = vmatmul.mubr.f32.gmra.mrb[0].mxu0 %v1881
        %v2336 = vpop.f32.mrb[0].mxu0
        %v2337 = vadd.f32 0.0, %v2336
        %v2338 = vpop.f32.mrb[0].mxu0
        %2339 = vmatprep.mubr.f32.mxu0 0.0
        %2340 = vmatmul.mubr.f32.gmra.mrb[0].mxu0 %v1884
        %v2341 = vpop.f32.mrb[0].mxu0
        %v2342 = vadd.f32 0.0, %v2341
        %v2343 = vpop.f32.mrb[0].mxu0
        %2344 = vmatprep.mubr.f32.mxu0 0.0
        %2345 = vmatmul.mubr.f32.gmra.mrb[0].mxu0 %v1887
        %v2346 = vpop.f32.mrb[0].mxu0
        %v2347 = vadd.f32 0.0, %v2346
        %v2348 = vpop.f32.mrb[0].mxu0
        %2349 = vmatprep.mubr.f32.mxu0 0.0
        %2350 = vmatmul.mubr.f32.gmra.mrb[0].mxu0 %v1890
        %v2351 = vpop.f32.mrb[0].mxu0
        %v2352 = vadd.f32 0.0, %v2351
        %v2353 = vpop.f32.mrb[0].mxu0
        %2354 = vmatprep.mubr.f32.mxu0 0.0
        %2355 = vmatmul.mubr.f32.gmra.mrb[0].mxu0 %v1893
        %v2356 = vpop.f32.mrb[0].mxu0
        %v2357 = vadd.f32 0.0, %v2356
        %v2358 = vpop.f32.mrb[0].mxu0
        %2359 = vmatprep.mubr.f32.mxu0 0.0
        %2360 = vmatmul.mubr.f32.gmra.mrb[0].mxu0 %v1896
        %v2361 = vpop.f32.mrb[0].mxu0
        %v2362 = vadd.f32 0.0, %v2361
        %v2363 = vpop.f32.mrb[0].mxu0
        %2364 = vmatprep.mubr.f32.mxu0 0.0
        %2365 = vmatmul.mubr.f32.gmra.mrb[0].mxu0 %v1899
        %v2366 = vpop.f32.mrb[0].mxu0
        %v2367 = vadd.f32 0.0, %v2366
        %v2368 = vpop.f32.mrb[0].mxu0
        %2369 = vmatprep.mubr.f32.mxu0 0.0
        %2370 = vmatmul.mubr.f32.gmra.mrb[0].mxu0 %v1902
        %v2371 = vpop.f32.mrb[0].mxu0
        %v2372 = vadd.f32 0.0, %v2371
        %v2373 = vpop.f32.mrb[0].mxu0
        %2374 = vdwg.mxu0
        %v2375 = vmul.f32 %v2337, 2.0
        %v2376 = vmul.f32 %v2342, 2.0
        %v2377 = vmul.f32 %v2347, 2.0
        %v2378 = vmul.f32 %v2352, 2.0
        %v2379 = vmul.f32 %v2357, 2.0
        %v2380 = vmul.f32 %v2362, 2.0
        %v2381 = vmul.f32 %v2367, 2.0
        %v2382 = vmul.f32 %v2372, 2.0
        %v2383 = vsub.f32 %v2375, %v1831
        %v2384 = vsub.f32 %v2376, %v1836
        %v2385 = vsub.f32 %v2377, %v1841
        %v2386 = vsub.f32 %v2378, %v1846
        %v2387 = vsub.f32 %v2379, %v1851
        %v2388 = vsub.f32 %v2380, %v1856
        %v2389 = vsub.f32 %v2381, %v1861
        %v2390 = vsub.f32 %v2382, %v1866
        %s2391 = scalar_lea.vmem %s13, 32
        %v2392 = vld [vmem:[%s2391] sm:$0xff]
        %v2393 = vld [vmem:[%s2391 + $0x8] sm:$0xff]
        %v2395 = vsel %vm691, %v2383, 0
        %v2398 = vsel %vm691, %v2384, 0
        %v2401 = vsel %vm691, %v2385, 0
        %v2404 = vsel %vm691, %v2386, 0
        %v2407 = vsel %vm691, %v2387, 0
        %v2410 = vsel %vm691, %v2388, 0
        %v2413 = vsel %vm691, %v2389, 0
        %v2416 = vsel %vm691, %v2390, 0
        %2418 = vmatprep.subr.mxu0 0.0
        %2419 = vmatpush1.msra.mxu0 %v2392
        %2420 = vmatprep.subr.mxu0 0.0
        %2421 = vmatpush1.msra.mxu0 %v2393
        %2422 = vmatprep.subr.mxu0 0.0
        %2423 = vmatpush1.msra.mxu0 0.0
        %2424 = vmatprep.subr.mxu0 0.0
        %2425 = vmatpush1.msra.mxu0 0.0
        %2426 = vmatprep.subr.mxu0 0.0
        %2427 = vmatpush1.msra.mxu0 0.0
        %2428 = vmatprep.subr.mxu0 0.0
        %2429 = vmatpush1.msra.mxu0 0.0
        %2430 = vmatprep.subr.mxu0 0.0
        %2431 = vmatpush1.msra.mxu0 0.0
        %2432 = vmatprep.subr.mxu0 0.0
        %2433 = vmatpush1.msra.mxu0 0.0
        %2434 = vmatprep.subr.mxu0 0.0
        %2435 = vmatpush1.msra.mxu0 0.0
        %2436 = vmatprep.subr.mxu0 0.0
        %2437 = vmatpush1.msra.mxu0 0.0
        %2438 = vmatprep.subr.mxu0 0.0
        %2439 = vmatpush1.msra.mxu0 0.0
        %2440 = vmatprep.subr.mxu0 0.0
        %2441 = vmatpush1.msra.mxu0 0.0
        %2442 = vmatprep.subr.mxu0 0.0
        %2443 = vmatpush1.msra.mxu0 0.0
        %2444 = vmatprep.subr.mxu0 0.0
        %2445 = vmatpush1.msra.mxu0 0.0
        %2446 = vmatprep.subr.mxu0 0.0
        %2447 = vmatpush1.msra.mxu0 0.0
        %2448 = vmatprep.subr.mxu0 0.0
        %2449 = vmatpush1.msra.mxu0 0.0
        %2450 = vmatprep.subr.mxu0 0.0
        %2451 = vmatpush1.msra.mxu0 0.0
        %2452 = vmatprep.subr.mxu0 0.0
        %2453 = vmatpush1.msra.mxu0 0.0
        %2454 = vmatprep.subr.mxu0 0.0
        %2455 = vmatpush1.msra.mxu0 0.0
        %2456 = vmatprep.subr.mxu0 0.0
        %2457 = vmatpush1.msra.mxu0 0.0
        %2458 = vmatprep.subr.mxu0 0.0
        %2459 = vmatpush1.msra.mxu0 0.0
        %2460 = vmatprep.subr.mxu0 0.0
        %2461 = vmatpush1.msra.mxu0 0.0
        %2462 = vmatprep.subr.mxu0 0.0
        %2463 = vmatpush1.msra.mxu0 0.0
        %2464 = vmatprep.subr.mxu0 0.0
        %2465 = vmatpush1.msra.mxu0 0.0
        %2466 = vmatprep.subr.mxu0 0.0
        %2467 = vmatpush1.msra.mxu0 0.0
        %2468 = vmatprep.subr.mxu0 0.0
        %2469 = vmatpush1.msra.mxu0 0.0
        %2470 = vmatprep.subr.mxu0 0.0
        %2471 = vmatpush1.msra.mxu0 0.0
        %2472 = vmatprep.subr.mxu0 0.0
        %2473 = vmatpush1.msra.mxu0 0.0
        %2474 = vmatprep.subr.mxu0 0.0
        %2475 = vmatpush1.msra.mxu0 0.0
        %2476 = vmatprep.subr.mxu0 0.0
        %2477 = vmatpush1.msra.mxu0 0.0
        %2478 = vmatprep.subr.mxu0 0.0
        %2479 = vmatpush1.msra.mxu0 0.0
        %2480 = vmatprep.subr.mxu0 0.0
        %2481 = vmatpush1.msra.mxu0 0.0
        %2482 = vmatprep.mubr.f32.mxu0 0.0
        %2483 = vmatmul.mubr.f32.gmra.mrb[0].mxu0 %v2395
        %v2484 = vpop.f32.mrb[0].mxu0
        %v2485 = vadd.f32 0.0, %v2484
        %v2486 = vpop.f32.mrb[0].mxu0
        %2487 = vmatprep.mubr.f32.mxu0 0.0
        %2488 = vmatmul.mubr.f32.gmra.mrb[0].mxu0 %v2398
        %v2489 = vpop.f32.mrb[0].mxu0
        %v2490 = vadd.f32 0.0, %v2489
        %v2491 = vpop.f32.mrb[0].mxu0
        %2492 = vmatprep.mubr.f32.mxu0 0.0
        %2493 = vmatmul.mubr.f32.gmra.mrb[0].mxu0 %v2401
        %v2494 = vpop.f32.mrb[0].mxu0
        %v2495 = vadd.f32 0.0, %v2494
        %v2496 = vpop.f32.mrb[0].mxu0
        %2497 = vmatprep.mubr.f32.mxu0 0.0
        %2498 = vmatmul.mubr.f32.gmra.mrb[0].mxu0 %v2404
        %v2499 = vpop.f32.mrb[0].mxu0
        %v2500 = vadd.f32 0.0, %v2499
        %v2501 = vpop.f32.mrb[0].mxu0
        %2502 = vmatprep.mubr.f32.mxu0 0.0
        %2503 = vmatmul.mubr.f32.gmra.mrb[0].mxu0 %v2407
        %v2504 = vpop.f32.mrb[0].mxu0
        %v2505 = vadd.f32 0.0, %v2504
        %v2506 = vpop.f32.mrb[0].mxu0
        %2507 = vmatprep.mubr.f32.mxu0 0.0
        %2508 = vmatmul.mubr.f32.gmra.mrb[0].mxu0 %v2410
        %v2509 = vpop.f32.mrb[0].mxu0
        %v2510 = vadd.f32 0.0, %v2509
        %v2511 = vpop.f32.mrb[0].mxu0
        %2512 = vmatprep.mubr.f32.mxu0 0.0
        %2513 = vmatmul.mubr.f32.gmra.mrb[0].mxu0 %v2413
        %v2514 = vpop.f32.mrb[0].mxu0
        %v2515 = vadd.f32 0.0, %v2514
        %v2516 = vpop.f32.mrb[0].mxu0
        %2517 = vmatprep.mubr.f32.mxu0 0.0
        %2518 = vmatmul.mubr.f32.gmra.mrb[0].mxu0 %v2416
        %v2519 = vpop.f32.mrb[0].mxu0
        %v2520 = vadd.f32 0.0, %v2519
        %v2521 = vpop.f32.mrb[0].mxu0
        %2522 = vdwg.mxu0
        %v2523 = vadd.f32 %v2232, %v2485
        %v2524 = vadd.f32 %v2237, %v2490
        %v2525 = vadd.f32 %v2242, %v2495
        %v2526 = vadd.f32 %v2247, %v2500
        %v2527 = vadd.f32 %v2252, %v2505
        %v2528 = vadd.f32 %v2257, %v2510
        %v2529 = vadd.f32 %v2262, %v2515
        %v2530 = vadd.f32 %v2267, %v2520
        %vm2531 = vcmask 23552
        %2532 = vst.msk [vmem:[%s487] sm:$0xff] %vm2531, %v2523
        %2533 = vst.msk [vmem:[%s487 + $0x8] sm:$0xff] %vm2531, %v2524
        %2534 = vst.msk [vmem:[%s487 + $0x10] sm:$0xff] %vm2531, %v2525
        %2535 = vst.msk [vmem:[%s487 + $0x18] sm:$0xff] %vm2531, %v2526
        %2536 = vst.msk [vmem:[%s487 + $0x20] sm:$0xff] %vm2531, %v2527
        %2537 = vst.msk [vmem:[%s487 + $0x28] sm:$0xff] %vm2531, %v2528
        %2538 = vst.msk [vmem:[%s487 + $0x30] sm:$0xff] %vm2531, %v2529
        %2539 = vst.msk [vmem:[%s487 + $0x38] sm:$0xff] %vm2531, %v2530
        %p2540 = scmp.lt.s32.totalorder %s28, 1
        %s2541 = scalar_select %p2540, %s28, 1
        %s2542 = smul.addr %s2541, 8
        %s2543 = smul.addr %s2542, 8
        %s2544 = scalar_lea.vmem %s14, %s2543
        // Predicated region
        $region89: #{tpu_custom_call.1} parent=75 // pred_check
          %p2545 = pneg %p340
        $region90: #{tpu_custom_call.1} parent=75 // pred_check_branch
          %2547 = sbr.rel (%p2545) target = $region92
        $region91: #{tpu_custom_call.1} parent=75 // pred_region
          _
        $region92: #{tpu_custom_call.1} parent=75 // pred_fallthru
          _
      $region76: #{tpu_custom_call.1} parent=5 // pred_fallthru
        _
      %p2548 = scmp.le.s32.totalorder 2, %s23
      // Predicated region
      $region93: #{tpu_custom_call.1} parent=5 // pred_check
        %p2549 = pneg %p2548
      $region94: #{tpu_custom_call.1} parent=5 // pred_check_branch
        %2551 = sbr.rel (%p2549) target = $region96
      $region95: #{tpu_custom_call.1} parent=5 // pred_region
        %s2552 = ssub.s32 %s23, 2
        // Predicated region
        $region97: #{tpu_custom_call.1} parent=95 // pred_check
          %p2553 = pneg %p346
        $region98: #{tpu_custom_call.1} parent=95 // pred_check_branch
          %2555 = sbr.rel (%p2553) target = $region100
        $region99: #{tpu_custom_call.1} parent=95 // pred_region
          %p2556 = scmp.lt.s32.totalorder %s29, 1
          %s2557 = scalar_select %p2556, %s29, 1
          %s2558 = smul.addr %s2557, 8
          %s2559 = smul.addr %s2558, 8
          %s2560 = scalar_lea.vmem %s14, %s2559
        $region100: #{tpu_custom_call.1} parent=95 // pred_fallthru
          _
      $region96: #{tpu_custom_call.1} parent=5 // pred_fallthru
        _
    $region6: #{tpu_custom_call.1} parent=1 // loop_footer
      %s27 = sadd.s32 1, %s23
    $region7: #{tpu_custom_call.1} parent=1 // loop_footer_branch
      %22 = sbr.rel target = $region3
    $region8: #{tpu_custom_call.1} parent=1 // loop_exit
      _
    %2561 = vsyncpa [#allocation3], 1
    %s2562 = scalar_lea.sflag [#allocation3], 1
    %2563 = vsyncpa %s2562, 1
    %2564 = vsyncpa [#allocation7], 1
    %2565 = vsyncpa [#allocation4], 1
    %s2566 = scalar_lea.sflag [#allocation4], 1
    %2567 = vsyncpa %s2566, 1

</llo_original>
